<compile_context>
chip_gen: v7x
topology: tpu7x:2x2x1
jax: 0.10.0
libtpu: 0.0.40
codegen_flags: <defaults>
</compile_context>

<pallas_src>
import math
import functools

import jax
import jax.numpy as jnp
from jax import lax
from jax.experimental import pallas as pl
from jax.experimental.pallas import tpu as pltpu


def _round_up(x, m):
    return (x + m - 1) // m * m


def _pick_seq_tile(s, target=256):
    """Largest multiple-of-8 divisor of s that is <= target, else full s."""
    if s <= target:
        return s
    t = (target // 8) * 8
    while t >= 8:
        if s % t == 0:
            return t
        t -= 8
    return s


# ----------------------------------------------------------------------------
# Fused flash-style kernel. One grid step = (batch b, q-tile qi, kv-tile kv).
#   kv == 0      : q_tile = x_q @ Wq_scaled + bq_scaled   (scale pre-folded)
#   every step   : k,v    = x_kv @ Wkv + bkv  (one fused matmul)
#                  per head: online-softmax update of (m, l, acc) scratch
#   kv == last   : normalize heads, one (tq, H*Ap) @ (H*Ap, Dp) projection
# ----------------------------------------------------------------------------
def _mhsa_flash_kernel(xq_ref, xkv_ref, wq_ref, bq_ref, wkv_ref, bkv_ref,
                       wp_ref, bp_ref, o_ref,
                       q_scr, m_scr, l_scr, acc_scr, *, num_heads, a_pad):
    H, Ap = num_heads, a_pad
    HAp = H * Ap
    kv = pl.program_id(2)
    n_kv = pl.num_programs(2)
    cdtype = xq_ref.dtype                     # native compute dtype (bf16/f32)

    # ---- init per (batch, q-tile): q projection + online-softmax state ----
    @pl.when(kv == 0)
    def _():
        xq = xq_ref[0]                                               # (tq, Dp)
        q = jnp.dot(xq, wq_ref[...], preferred_element_type=jnp.float32)
        q_scr[...] = (q + bq_ref[...]).astype(q_scr.dtype)           # (tq, HAp)
        m_scr[...] = jnp.full(m_scr.shape, -jnp.inf, m_scr.dtype)
        l_scr[...] = jnp.zeros(l_scr.shape, l_scr.dtype)
        acc_scr[...] = jnp.zeros(acc_scr.shape, acc_scr.dtype)

    # ---- K/V projection for this kv block (single fused MXU matmul) ----
    xkv = xkv_ref[0]                                                 # (tkv, Dp)
    kvp = jnp.dot(xkv, wkv_ref[...], preferred_element_type=jnp.float32)
    kvp = (kvp + bkv_ref[...]).astype(cdtype)                        # (tkv, 2*HAp)
    k_all = kvp[:, :HAp]                                             # 128-aligned views
    v_all = kvp[:, HAp:]

    # ---- per-head online softmax; state lives in VMEM scratch ----
    for h in range(H):                       # static loop; see TODO for big H
        hs = slice(h * Ap, (h + 1) * Ap)     # 128-lane-aligned static slice
        qh = q_scr[:, hs]                    # (tq, Ap)   compute dtype
        kh = k_all[:, hs]                    # (tkv, Ap)
        vh = v_all[:, hs]
        # q @ k^T without a transpose (contract the Ap axis of both); the
        # 1/sqrt(A) scale is already folded into Wq.
        s = lax.dot_general(qh, kh, (((1,), (1,)), ((), ())),
                            preferred_element_type=jnp.float32)      # (tq, tkv)
        m_prev = m_scr[h]                                            # (tq, 1)
        m_new = jnp.maximum(m_prev, jnp.max(s, axis=-1, keepdims=True))
        alpha = jnp.exp(m_prev - m_new)
        p = jnp.exp(s - m_new)
        l_scr[h] = alpha * l_scr[h] + jnp.sum(p, axis=-1, keepdims=True)
        pv = jnp.dot(p.astype(cdtype), vh, preferred_element_type=jnp.float32)
        acc_scr[:, hs] = alpha * acc_scr[:, hs] + pv
        m_scr[h] = m_new

    # ---- finalize: normalize each head, one full-K output projection ----
    @pl.when(kv == n_kv - 1)
    def _():
        for h in range(H):
            hs = slice(h * Ap, (h + 1) * Ap)
            inv = pl.reciprocal(l_scr[h], approx=True)    # EUP slot, frees VALU
            acc_scr[:, hs] = acc_scr[:, hs] * inv
        heads = acc_scr[...].astype(cdtype)                          # (tq, HAp)
        y = jnp.dot(heads, wp_ref[...], preferred_element_type=jnp.float32)
        o_ref[0] = (y + bp_ref[...]).astype(o_ref.dtype)


# ----------------------------------------------------------------------------
# Wrapper: all layout plumbing (head stacking, 128-lane padding, scale
# folding, transposes) lives here, not in the kernel.
# ----------------------------------------------------------------------------
def multi_head_self_attention(params, x):
    """x: (B, S, model_dim) -> (B, S, model_dim)."""
    B, S, D = x.shape
    H, A, _ = params["wq"].shape
    Ap = _round_up(A, 128)          # per-head attention dim, lane aligned
    Dp = _round_up(D, 128)          # model dim, lane aligned
    HAp = H * Ap
    cdtype = x.dtype
    itemsize = jnp.dtype(cdtype).itemsize
    scale = 1.0 / math.sqrt(A)      # uses the ORIGINAL attention dim

    def head_stack(w, b, scale_=1.0):
        # w: (H, A, D) torch-Linear layout; b: (H, 1, A)
        wpad = jnp.pad(w, ((0, 0), (0, Ap - A), (0, Dp - D)))        # (H, Ap, Dp)
        wmat = (wpad.transpose(2, 0, 1).reshape(Dp, HAp) * scale_).astype(cdtype)
        bpad = jnp.pad(b.reshape(H, A), ((0, 0), (0, Ap - A)))
        bvec = (bpad.reshape(1, HAp) * scale_).astype(jnp.float32)
        return wmat, bvec

    # Scale folded into the query projection -> no per-element scores multiply.
    wq, bq = head_stack(params["wq"], params["bq"], scale)
    wk, bk = head_stack(params["wk"], params["bk"])
    wv, bv = head_stack(params["wv"], params["bv"])
    wkv = jnp.concatenate([wk, wv], axis=1)                          # (Dp, 2*HAp)
    bkv = jnp.concatenate([bk, bv], axis=1)                          # (1, 2*HAp)

    # Output projection: (D, H*A) -> (HAp, Dp), rows 128-aligned per head.
    wp = params["wp"].reshape(D, H, A)
    wp = jnp.pad(wp, ((0, Dp - D), (0, 0), (0, Ap - A)))             # (Dp, H, Ap)
    wp = wp.transpose(1, 2, 0).reshape(HAp, Dp).astype(cdtype)       # (HAp, Dp)
    bp = jnp.pad(params["bp"].reshape(1, D),
                 ((0, 0), (0, Dp - D))).astype(jnp.float32)          # (1, Dp)

    xp = jnp.pad(x, ((0, 0), (0, 0), (0, Dp - D)))                   # (B, S, Dp)

    # Sequence tiling (query rows parallel; kv blocks sequential/arbitrary).
    tq = _pick_seq_tile(S)
    tkv = _pick_seq_tile(S)
    QT, KVT = S // tq, S // tkv

    kernel = functools.partial(_mhsa_flash_kernel, num_heads=H, a_pad=Ap)

    # Explicit VMEM budget from the actual per-step buffers (x2 headroom).
    weight_bytes = ((wq.size + wkv.size + wp.size) * itemsize
                    + (bq.size + bkv.size + bp.size) * 4)
    tile_bytes = 2 * (tq * Dp + tkv * Dp + tq * Dp) * itemsize       # dbl-buffered
    scratch_bytes = tq * HAp * (itemsize + 4) + 2 * H * tq * 4
    transient_bytes = tkv * 2 * HAp * 4                              # kvp slab
    vmem_est = weight_bytes + tile_bytes + scratch_bytes + transient_bytes
    vmem_limit = int(min(64 * 1024 * 1024,
                         max(2 * vmem_est + (2 << 20), 16 * 1024 * 1024)))

    flops = (2 * B * S * Dp * HAp                 # q projection
             + 2 * B * QT * S * Dp * (2 * HAp)    # k/v projection (per q tile)
             + 4 * B * H * S * S * Ap             # scores + p@v
             + 2 * B * S * HAp * Dp)              # output projection
    bytes_accessed = int(((1 + QT) * xp.size + B * S * Dp) * itemsize
                         + weight_bytes)          # weights resident: counted once
    cost = pl.CostEstimate(flops=int(flops),
                           transcendentals=int(B * H * S * S),
                           bytes_accessed=bytes_accessed)

    out = pl.pallas_call(
        kernel,
        out_shape=jax.ShapeDtypeStruct((B, S, Dp), x.dtype),
        grid_spec=pltpu.PrefetchScalarGridSpec(
            num_scalar_prefetch=0,
            grid=(B, QT, KVT),
            in_specs=[
                pl.BlockSpec((1, tq, Dp), lambda b, qi, kv: (b, qi, 0)),   # x (q rows)
                pl.BlockSpec((1, tkv, Dp), lambda b, qi, kv: (b, kv, 0)),  # x (kv rows)
                pl.BlockSpec((Dp, HAp), lambda b, qi, kv: (0, 0)),         # Wq (scaled)
                pl.BlockSpec((1, HAp), lambda b, qi, kv: (0, 0)),          # bq (scaled)
                pl.BlockSpec((Dp, 2 * HAp), lambda b, qi, kv: (0, 0)),     # Wkv
                pl.BlockSpec((1, 2 * HAp), lambda b, qi, kv: (0, 0)),      # bkv
                pl.BlockSpec((HAp, Dp), lambda b, qi, kv: (0, 0)),         # Wp^T
                pl.BlockSpec((1, Dp), lambda b, qi, kv: (0, 0)),           # bp
            ],
            out_specs=pl.BlockSpec((1, tq, Dp), lambda b, qi, kv: (b, qi, 0)),
            scratch_shapes=[
                pltpu.VMEM((tq, HAp), cdtype),           # q tile (all heads)
                pltpu.VMEM((H, tq, 1), jnp.float32),     # running max m
                pltpu.VMEM((H, tq, 1), jnp.float32),     # running denom l
                pltpu.VMEM((tq, HAp), jnp.float32),      # per-head output acc
            ],
        ),
        compiler_params=pltpu.CompilerParams(
            dimension_semantics=("parallel", "parallel", "arbitrary"),
            vmem_limit_bytes=vmem_limit),
        cost_estimate=cost,
    )(xp, xp, wq, bq, wkv, bkv, wp, bp)

    return out[..., :D]


# ----------------------------------------------------------------------------
# Parameter container (PyTorch Linear-style shapes/ordering)
# ----------------------------------------------------------------------------
def init_params(key, num_heads, model_dim, attention_dim, dtype=jnp.float32):
    ks = jax.random.split(key, 8)
    lim_in = 1.0 / math.sqrt(model_dim)
    lim_proj = 1.0 / math.sqrt(num_heads * attention_dim)

    def u(k, shape, lim):
        return jax.random.uniform(k, shape, dtype=dtype, minval=-lim, maxval=lim)

    return {
        "wq": u(ks[0], (num_heads, attention_dim, model_dim), lim_in),
        "wk": u(ks[1], (num_heads, attention_dim, model_dim), lim_in),
        "wv": u(ks[2], (num_heads, attention_dim, model_dim), lim_in),
        "bq": u(ks[3], (num_heads, 1, attention_dim), lim_in),
        "bk": u(ks[4], (num_heads, 1, attention_dim), lim_in),
        "bv": u(ks[5], (num_heads, 1, attention_dim), lim_in),
        "wp": u(ks[6], (model_dim, num_heads * attention_dim), lim_proj),
        "bp": u(ks[7], (1, model_dim), lim_proj),
    }


# Pure-JAX reference (mirrors the PyTorch module) for correctness checking.
def _reference(params, x):
    H, A = params["wq"].shape[0], params["wq"].shape[1]
    outs = []
    for h in range(H):
        q = x @ params["wq"][h].T + params["bq"][h]
        k = x @ params["wk"][h].T + params["bk"][h]
        v = x @ params["wv"][h].T + params["bv"][h]
        s = jnp.einsum("bsa,bta->bst", q, k) / math.sqrt(A)
        p = jax.nn.softmax(s, axis=-1)
        outs.append(jnp.einsum("bst,bta->bsa", p, v))
    cat = jnp.concatenate(outs, axis=-1)
    return cat @ params["wp"].T + params["bp"][0]


if __name__ == "__main__":
    num_heads = 4
    model_dim = 32
    attention_dim = 16
    B, S = 2, 8

    key = jax.random.PRNGKey(0)
    pkey, xkey = jax.random.split(key)
    params = init_params(pkey, num_heads, model_dim, attention_dim)
    x = jax.random.normal(xkey, (B, S, model_dim), dtype=jnp.float32)

    out = multi_head_self_attention(params, x)
    jax.block_until_ready(out)

    ref = _reference(params, x)
    assert out.shape == (B, S, model_dim)
    # Slightly loose tolerance: softmax denominator uses the EUP approximate
    # reciprocal (pl.reciprocal(approx=True)).
    assert jnp.allclose(out, ref, atol=1e-2, rtol=1e-2), "mismatch vs reference"

    print("KERNEL_OK")
</pallas_src>

<mosaic_0001>
module attributes {stable_mosaic.version = 11 : i64} {
  func.func @_mhsa_flash_kernel(%arg0: i32, %arg1: i32, %arg2: i32, %arg3: memref<1x8x128xf32, #tpu.memory_space<vmem>>, %arg4: memref<1x8x128xf32, #tpu.memory_space<vmem>>, %arg5: memref<128x512xf32, #tpu.memory_space<vmem>>, %arg6: memref<1x512xf32, #tpu.memory_space<vmem>>, %arg7: memref<128x1024xf32, #tpu.memory_space<vmem>>, %arg8: memref<1x1024xf32, #tpu.memory_space<vmem>>, %arg9: memref<512x128xf32, #tpu.memory_space<vmem>>, %arg10: memref<1x128xf32, #tpu.memory_space<vmem>>, %arg11: memref<1x8x128xf32, #tpu.memory_space<vmem>>, %arg12: memref<8x512xf32, #tpu.memory_space<vmem>>, %arg13: memref<4x8x1xf32, #tpu.memory_space<vmem>>, %arg14: memref<4x8x1xf32, #tpu.memory_space<vmem>>, %arg15: memref<8x512xf32, #tpu.memory_space<vmem>>) attributes {dimension_semantics = [#tpu.dimension_semantics<parallel>, #tpu.dimension_semantics<parallel>, #tpu.dimension_semantics<arbitrary>], iteration_bounds = array<i64: 2, 1, 1>, scalar_prefetch = 0 : i64, scratch_operands = 4 : i64, tpu.core_type = #tpu.core_type<tc>, window_params = [{transform_indices = @transform_0, window_bounds = array<i64: 1, 8, 128>}, {transform_indices = @transform_1, window_bounds = array<i64: 1, 8, 128>}, {pipeline_mode = #tpu.pipeline_mode<synchronous>, transform_indices = @transform_2, window_bounds = array<i64: 128, 512>}, {pipeline_mode = #tpu.pipeline_mode<synchronous>, transform_indices = @transform_3, window_bounds = array<i64: 1, 512>}, {pipeline_mode = #tpu.pipeline_mode<synchronous>, transform_indices = @transform_4, window_bounds = array<i64: 128, 1024>}, {pipeline_mode = #tpu.pipeline_mode<synchronous>, transform_indices = @transform_5, window_bounds = array<i64: 1, 1024>}, {pipeline_mode = #tpu.pipeline_mode<synchronous>, transform_indices = @transform_6, window_bounds = array<i64: 512, 128>}, {pipeline_mode = #tpu.pipeline_mode<synchronous>, transform_indices = @transform_7, window_bounds = array<i64: 1, 128>}, {transform_indices = @transform_8, window_bounds = array<i64: 1, 8, 128>}]} {
    %c0_i32 = arith.constant 0 : i32
    %0 = arith.cmpi eq, %arg2, %c0_i32 : i32
    %1 = arith.extui %0 : i1 to i32
    %c0_i32_0 = arith.constant 0 : i32
    %2 = arith.cmpi ne, %1, %c0_i32_0 : i32
    scf.if %2 {
      %c0_91 = arith.constant 0 : index
      %c0_92 = arith.constant 0 : index
      %c0_93 = arith.constant 0 : index
      %143 = vector.load %arg3[%c0_91, %c0_92, %c0_93] : memref<1x8x128xf32, #tpu.memory_space<vmem>>, vector<1x8x128xf32>
      %144 = vector.shape_cast %143 : vector<1x8x128xf32> to vector<8x128xf32>
      %c0_94 = arith.constant 0 : index
      %c0_95 = arith.constant 0 : index
      %145 = vector.load %arg5[%c0_94, %c0_95] : memref<128x512xf32, #tpu.memory_space<vmem>>, vector<128x512xf32>
      %cst_96 = arith.constant dense<0.000000e+00> : vector<8x512xf32>
      %146 = tpu.matmul %144, %145, %cst_96 {dimension_numbers = #tpu.dot_dimension_numbers<[1], [0], [0], [1], [0, 0, 1, 1], [], []>} : vector<8x128xf32>, vector<128x512xf32>, vector<8x512xf32> -> vector<8x512xf32>
      %c0_97 = arith.constant 0 : index
      %c0_98 = arith.constant 0 : index
      %147 = vector.load %arg6[%c0_97, %c0_98] : memref<1x512xf32, #tpu.memory_space<vmem>>, vector<1x512xf32>
      %148 = vector.broadcast %147 : vector<1x512xf32> to vector<8x512xf32>
      %149 = arith.addf %146, %148 : vector<8x512xf32>
      %c0_99 = arith.constant 0 : index
      %c0_100 = arith.constant 0 : index
      %150 = vector.load %arg12[%c0_99, %c0_100] : memref<8x512xf32, #tpu.memory_space<vmem>>, vector<8x512xf32>
      tpu.vector_store %arg12[%c0_99, %c0_100], %149 {strides = array<i32>} : memref<8x512xf32, #tpu.memory_space<vmem>>, vector<8x512xf32>,
      %cst_101 = arith.constant 0xFF800000 : f32
      %151 = vector.broadcast %cst_101 : f32 to vector<4x8x1xf32>
      %c0_102 = arith.constant 0 : index
      %c0_103 = arith.constant 0 : index
      %c0_104 = arith.constant 0 : index
      %152 = vector.load %arg13[%c0_102, %c0_103, %c0_104] : memref<4x8x1xf32, #tpu.memory_space<vmem>>, vector<4x8x1xf32>
      tpu.vector_store %arg13[%c0_102, %c0_103, %c0_104], %151 {strides = array<i32>} : memref<4x8x1xf32, #tpu.memory_space<vmem>>, vector<4x8x1xf32>,
      %cst_105 = arith.constant 0.000000e+00 : f32
      %153 = vector.broadcast %cst_105 : f32 to vector<4x8x1xf32>
      %c0_106 = arith.constant 0 : index
      %c0_107 = arith.constant 0 : index
      %c0_108 = arith.constant 0 : index
      %154 = vector.load %arg14[%c0_106, %c0_107, %c0_108] : memref<4x8x1xf32, #tpu.memory_space<vmem>>, vector<4x8x1xf32>
      tpu.vector_store %arg14[%c0_106, %c0_107, %c0_108], %153 {strides = array<i32>} : memref<4x8x1xf32, #tpu.memory_space<vmem>>, vector<4x8x1xf32>,
      %cst_109 = arith.constant 0.000000e+00 : f32
      %155 = vector.broadcast %cst_109 : f32 to vector<8x512xf32>
      %c0_110 = arith.constant 0 : index
      %c0_111 = arith.constant 0 : index
      %156 = vector.load %arg15[%c0_110, %c0_111] : memref<8x512xf32, #tpu.memory_space<vmem>>, vector<8x512xf32>
      tpu.vector_store %arg15[%c0_110, %c0_111], %155 {strides = array<i32>} : memref<8x512xf32, #tpu.memory_space<vmem>>, vector<8x512xf32>,
    } else {
    }
    %c0 = arith.constant 0 : index
    %c0_1 = arith.constant 0 : index
    %c0_2 = arith.constant 0 : index
    %3 = vector.load %arg4[%c0, %c0_1, %c0_2] : memref<1x8x128xf32, #tpu.memory_space<vmem>>, vector<1x8x128xf32>
    %4 = vector.shape_cast %3 : vector<1x8x128xf32> to vector<8x128xf32>
    %c0_3 = arith.constant 0 : index
    %c0_4 = arith.constant 0 : index
    %5 = vector.load %arg7[%c0_3, %c0_4] : memref<128x1024xf32, #tpu.memory_space<vmem>>, vector<128x1024xf32>
    %cst = arith.constant dense<0.000000e+00> : vector<8x1024xf32>
    %6 = tpu.matmul %4, %5, %cst {dimension_numbers = #tpu.dot_dimension_numbers<[1], [0], [0], [1], [0, 0, 1, 1], [], []>} : vector<8x128xf32>, vector<128x1024xf32>, vector<8x1024xf32> -> vector<8x1024xf32>
    %c0_5 = arith.constant 0 : index
    %c0_6 = arith.constant 0 : index
    %7 = vector.load %arg8[%c0_5, %c0_6] : memref<1x1024xf32, #tpu.memory_space<vmem>>, vector<1x1024xf32>
    %8 = vector.broadcast %7 : vector<1x1024xf32> to vector<8x1024xf32>
    %9 = arith.addf %6, %8 : vector<8x1024xf32>
    %10 = vector.extract_strided_slice %9 {offsets = [0, 0], sizes = [8, 512], strides = [1, 1]} : vector<8x1024xf32> to vector<8x512xf32>
    %11 = vector.extract_strided_slice %9 {offsets = [0, 512], sizes = [8, 512], strides = [1, 1]} : vector<8x1024xf32> to vector<8x512xf32>
    %c0_7 = arith.constant 0 : index
    %c0_8 = arith.constant 0 : index
    %12 = vector.load %arg12[%c0_7, %c0_8] : memref<8x512xf32, #tpu.memory_space<vmem>>, vector<8x128xf32>
    %13 = vector.extract_strided_slice %10 {offsets = [0, 0], sizes = [8, 128], strides = [1, 1]} : vector<8x512xf32> to vector<8x128xf32>
    %14 = vector.extract_strided_slice %11 {offsets = [0, 0], sizes = [8, 128], strides = [1, 1]} : vector<8x512xf32> to vector<8x128xf32>
    %cst_9 = arith.constant dense<0.000000e+00> : vector<8x8xf32>
    %15 = tpu.matmul %12, %13, %cst_9 {dimension_numbers = #tpu.dot_dimension_numbers<[1], [1], [0], [0], [0, 0, 1, 0], [], []>} : vector<8x128xf32>, vector<8x128xf32>, vector<8x8xf32> -> vector<8x8xf32>
    %c0_10 = arith.constant 0 : index
    %c0_11 = arith.constant 0 : index
    %c0_12 = arith.constant 0 : index
    %16 = vector.load %arg13[%c0_10, %c0_11, %c0_12] : memref<4x8x1xf32, #tpu.memory_space<vmem>>, vector<1x8x1xf32>
    %17 = vector.shape_cast %16 : vector<1x8x1xf32> to vector<8x1xf32>
    %cst_13 = arith.constant dense<0xFF800000> : vector<8xf32>
    %18 = vector.multi_reduction <maximumf>, %15, %cst_13 [1] : vector<8x8xf32> to vector<8xf32>
    %19 = vector.shape_cast %18 : vector<8xf32> to vector<8x1xf32>
    %20 = arith.maximumf %17, %19 : vector<8x1xf32>
    %21 = arith.subf %17, %20 : vector<8x1xf32>
    %22 = math.exp %21 : vector<8x1xf32>
    %23 = vector.broadcast %20 : vector<8x1xf32> to vector<8x8xf32>
    %24 = arith.subf %15, %23 : vector<8x8xf32>
    %25 = math.exp %24 : vector<8x8xf32>
    %c0_14 = arith.constant 0 : index
    %c0_15 = arith.constant 0 : index
    %c0_16 = arith.constant 0 : index
    %26 = vector.load %arg14[%c0_14, %c0_15, %c0_16] : memref<4x8x1xf32, #tpu.memory_space<vmem>>, vector<1x8x1xf32>
    %27 = vector.shape_cast %26 : vector<1x8x1xf32> to vector<8x1xf32>
    %28 = arith.mulf %22, %27 : vector<8x1xf32>
    %cst_17 = arith.constant dense<0.000000e+00> : vector<8xf32>
    %29 = vector.multi_reduction <add>, %25, %cst_17 [1] : vector<8x8xf32> to vector<8xf32>
    %30 = vector.shape_cast %29 : vector<8xf32> to vector<8x1xf32>
    %31 = arith.addf %28, %30 : vector<8x1xf32>
    %c0_18 = arith.constant 0 : index
    %c0_19 = arith.constant 0 : index
    %c0_20 = arith.constant 0 : index
    %32 = vector.load %arg14[%c0_18, %c0_19, %c0_20] : memref<4x8x1xf32, #tpu.memory_space<vmem>>, vector<1x8x1xf32>
    %33 = vector.shape_cast %32 : vector<1x8x1xf32> to vector<8x1xf32>
    %34 = vector.shape_cast %31 : vector<8x1xf32> to vector<1x8x1xf32>
    tpu.vector_store %arg14[%c0_18, %c0_19, %c0_20], %34 {strides = array<i32>} : memref<4x8x1xf32, #tpu.memory_space<vmem>>, vector<1x8x1xf32>,
    %cst_21 = arith.constant dense<0.000000e+00> : vector<8x128xf32>
    %35 = tpu.matmul %25, %14, %cst_21 {dimension_numbers = #tpu.dot_dimension_numbers<[1], [0], [0], [1], [0, 0, 1, 1], [], []>} : vector<8x8xf32>, vector<8x128xf32>, vector<8x128xf32> -> vector<8x128xf32>
    %c0_22 = arith.constant 0 : index
    %c0_23 = arith.constant 0 : index
    %36 = vector.load %arg15[%c0_22, %c0_23] : memref<8x512xf32, #tpu.memory_space<vmem>>, vector<8x128xf32>
    %37 = vector.broadcast %22 : vector<8x1xf32> to vector<8x128xf32>
    %38 = arith.mulf %37, %36 : vector<8x128xf32>
    %39 = arith.addf %38, %35 : vector<8x128xf32>
    %c0_24 = arith.constant 0 : index
    %c0_25 = arith.constant 0 : index
    %40 = vector.load %arg15[%c0_24, %c0_25] : memref<8x512xf32, #tpu.memory_space<vmem>>, vector<8x128xf32>
    tpu.vector_store %arg15[%c0_24, %c0_25], %39 {strides = array<i32>} : memref<8x512xf32, #tpu.memory_space<vmem>>, vector<8x128xf32>,
    %c0_26 = arith.constant 0 : index
    %c0_27 = arith.constant 0 : index
    %c0_28 = arith.constant 0 : index
    %41 = vector.load %arg13[%c0_26, %c0_27, %c0_28] : memref<4x8x1xf32, #tpu.memory_space<vmem>>, vector<1x8x1xf32>
    %42 = vector.shape_cast %41 : vector<1x8x1xf32> to vector<8x1xf32>
    %43 = vector.shape_cast %20 : vector<8x1xf32> to vector<1x8x1xf32>
    tpu.vector_store %arg13[%c0_26, %c0_27, %c0_28], %43 {strides = array<i32>} : memref<4x8x1xf32, #tpu.memory_space<vmem>>, vector<1x8x1xf32>,
    %c0_29 = arith.constant 0 : index
    %c128 = arith.constant 128 : index
    %44 = vector.load %arg12[%c0_29, %c128] : memref<8x512xf32, #tpu.memory_space<vmem>>, vector<8x128xf32>
    %45 = vector.extract_strided_slice %10 {offsets = [0, 128], sizes = [8, 128], strides = [1, 1]} : vector<8x512xf32> to vector<8x128xf32>
    %46 = vector.extract_strided_slice %11 {offsets = [0, 128], sizes = [8, 128], strides = [1, 1]} : vector<8x512xf32> to vector<8x128xf32>
    %cst_30 = arith.constant dense<0.000000e+00> : vector<8x8xf32>
    %47 = tpu.matmul %44, %45, %cst_30 {dimension_numbers = #tpu.dot_dimension_numbers<[1], [1], [0], [0], [0, 0, 1, 0], [], []>} : vector<8x128xf32>, vector<8x128xf32>, vector<8x8xf32> -> vector<8x8xf32>
    %c1 = arith.constant 1 : index
    %c0_31 = arith.constant 0 : index
    %c0_32 = arith.constant 0 : index
    %48 = vector.load %arg13[%c1, %c0_31, %c0_32] : memref<4x8x1xf32, #tpu.memory_space<vmem>>, vector<1x8x1xf32>
    %49 = vector.shape_cast %48 : vector<1x8x1xf32> to vector<8x1xf32>
    %cst_33 = arith.constant dense<0xFF800000> : vector<8xf32>
    %50 = vector.multi_reduction <maximumf>, %47, %cst_33 [1] : vector<8x8xf32> to vector<8xf32>
    %51 = vector.shape_cast %50 : vector<8xf32> to vector<8x1xf32>
    %52 = arith.maximumf %49, %51 : vector<8x1xf32>
    %53 = arith.subf %49, %52 : vector<8x1xf32>
    %54 = math.exp %53 : vector<8x1xf32>
    %55 = vector.broadcast %52 : vector<8x1xf32> to vector<8x8xf32>
    %56 = arith.subf %47, %55 : vector<8x8xf32>
    %57 = math.exp %56 : vector<8x8xf32>
    %c1_34 = arith.constant 1 : index
    %c0_35 = arith.constant 0 : index
    %c0_36 = arith.constant 0 : index
    %58 = vector.load %arg14[%c1_34, %c0_35, %c0_36] : memref<4x8x1xf32, #tpu.memory_space<vmem>>, vector<1x8x1xf32>
    %59 = vector.shape_cast %58 : vector<1x8x1xf32> to vector<8x1xf32>
    %60 = arith.mulf %54, %59 : vector<8x1xf32>
    %cst_37 = arith.constant dense<0.000000e+00> : vector<8xf32>
    %61 = vector.multi_reduction <add>, %57, %cst_37 [1] : vector<8x8xf32> to vector<8xf32>
    %62 = vector.shape_cast %61 : vector<8xf32> to vector<8x1xf32>
    %63 = arith.addf %60, %62 : vector<8x1xf32>
    %c1_38 = arith.constant 1 : index
    %c0_39 = arith.constant 0 : index
    %c0_40 = arith.constant 0 : index
    %64 = vector.load %arg14[%c1_38, %c0_39, %c0_40] : memref<4x8x1xf32, #tpu.memory_space<vmem>>, vector<1x8x1xf32>
    %65 = vector.shape_cast %64 : vector<1x8x1xf32> to vector<8x1xf32>
    %66 = vector.shape_cast %63 : vector<8x1xf32> to vector<1x8x1xf32>
    tpu.vector_store %arg14[%c1_38, %c0_39, %c0_40], %66 {strides = array<i32>} : memref<4x8x1xf32, #tpu.memory_space<vmem>>, vector<1x8x1xf32>,
    %cst_41 = arith.constant dense<0.000000e+00> : vector<8x128xf32>
    %67 = tpu.matmul %57, %46, %cst_41 {dimension_numbers = #tpu.dot_dimension_numbers<[1], [0], [0], [1], [0, 0, 1, 1], [], []>} : vector<8x8xf32>, vector<8x128xf32>, vector<8x128xf32> -> vector<8x128xf32>
    %c0_42 = arith.constant 0 : index
    %c128_43 = arith.constant 128 : index
    %68 = vector.load %arg15[%c0_42, %c128_43] : memref<8x512xf32, #tpu.memory_space<vmem>>, vector<8x128xf32>
    %69 = vector.broadcast %54 : vector<8x1xf32> to vector<8x128xf32>
    %70 = arith.mulf %69, %68 : vector<8x128xf32>
    %71 = arith.addf %70, %67 : vector<8x128xf32>
    %c0_44 = arith.constant 0 : index
    %c128_45 = arith.constant 128 : index
    %72 = vector.load %arg15[%c0_44, %c128_45] : memref<8x512xf32, #tpu.memory_space<vmem>>, vector<8x128xf32>
    tpu.vector_store %arg15[%c0_44, %c128_45], %71 {strides = array<i32>} : memref<8x512xf32, #tpu.memory_space<vmem>>, vector<8x128xf32>,
    %c1_46 = arith.constant 1 : index
    %c0_47 = arith.constant 0 : index
    %c0_48 = arith.constant 0 : index
    %73 = vector.load %arg13[%c1_46, %c0_47, %c0_48] : memref<4x8x1xf32, #tpu.memory_space<vmem>>, vector<1x8x1xf32>
    %74 = vector.shape_cast %73 : vector<1x8x1xf32> to vector<8x1xf32>
    %75 = vector.shape_cast %52 : vector<8x1xf32> to vector<1x8x1xf32>
    tpu.vector_store %arg13[%c1_46, %c0_47, %c0_48], %75 {strides = array<i32>} : memref<4x8x1xf32, #tpu.memory_space<vmem>>, vector<1x8x1xf32>,
    %c0_49 = arith.constant 0 : index
    %c256 = arith.constant 256 : index
    %76 = vector.load %arg12[%c0_49, %c256] : memref<8x512xf32, #tpu.memory_space<vmem>>, vector<8x128xf32>
    %77 = vector.extract_strided_slice %10 {offsets = [0, 256], sizes = [8, 128], strides = [1, 1]} : vector<8x512xf32> to vector<8x128xf32>
    %78 = vector.extract_strided_slice %11 {offsets = [0, 256], sizes = [8, 128], strides = [1, 1]} : vector<8x512xf32> to vector<8x128xf32>
    %cst_50 = arith.constant dense<0.000000e+00> : vector<8x8xf32>
    %79 = tpu.matmul %76, %77, %cst_50 {dimension_numbers = #tpu.dot_dimension_numbers<[1], [1], [0], [0], [0, 0, 1, 0], [], []>} : vector<8x128xf32>, vector<8x128xf32>, vector<8x8xf32> -> vector<8x8xf32>
    %c2 = arith.constant 2 : index
    %c0_51 = arith.constant 0 : index
    %c0_52 = arith.constant 0 : index
    %80 = vector.load %arg13[%c2, %c0_51, %c0_52] : memref<4x8x1xf32, #tpu.memory_space<vmem>>, vector<1x8x1xf32>
    %81 = vector.shape_cast %80 : vector<1x8x1xf32> to vector<8x1xf32>
    %cst_53 = arith.constant dense<0xFF800000> : vector<8xf32>
    %82 = vector.multi_reduction <maximumf>, %79, %cst_53 [1] : vector<8x8xf32> to vector<8xf32>
    %83 = vector.shape_cast %82 : vector<8xf32> to vector<8x1xf32>
    %84 = arith.maximumf %81, %83 : vector<8x1xf32>
    %85 = arith.subf %81, %84 : vector<8x1xf32>
    %86 = math.exp %85 : vector<8x1xf32>
    %87 = vector.broadcast %84 : vector<8x1xf32> to vector<8x8xf32>
    %88 = arith.subf %79, %87 : vector<8x8xf32>
    %89 = math.exp %88 : vector<8x8xf32>
    %c2_54 = arith.constant 2 : index
    %c0_55 = arith.constant 0 : index
    %c0_56 = arith.constant 0 : index
    %90 = vector.load %arg14[%c2_54, %c0_55, %c0_56] : memref<4x8x1xf32, #tpu.memory_space<vmem>>, vector<1x8x1xf32>
    %91 = vector.shape_cast %90 : vector<1x8x1xf32> to vector<8x1xf32>
    %92 = arith.mulf %86, %91 : vector<8x1xf32>
    %cst_57 = arith.constant dense<0.000000e+00> : vector<8xf32>
    %93 = vector.multi_reduction <add>, %89, %cst_57 [1] : vector<8x8xf32> to vector<8xf32>
    %94 = vector.shape_cast %93 : vector<8xf32> to vector<8x1xf32>
    %95 = arith.addf %92, %94 : vector<8x1xf32>
    %c2_58 = arith.constant 2 : index
    %c0_59 = arith.constant 0 : index
    %c0_60 = arith.constant 0 : index
    %96 = vector.load %arg14[%c2_58, %c0_59, %c0_60] : memref<4x8x1xf32, #tpu.memory_space<vmem>>, vector<1x8x1xf32>
    %97 = vector.shape_cast %96 : vector<1x8x1xf32> to vector<8x1xf32>
    %98 = vector.shape_cast %95 : vector<8x1xf32> to vector<1x8x1xf32>
    tpu.vector_store %arg14[%c2_58, %c0_59, %c0_60], %98 {strides = array<i32>} : memref<4x8x1xf32, #tpu.memory_space<vmem>>, vector<1x8x1xf32>,
    %cst_61 = arith.constant dense<0.000000e+00> : vector<8x128xf32>
    %99 = tpu.matmul %89, %78, %cst_61 {dimension_numbers = #tpu.dot_dimension_numbers<[1], [0], [0], [1], [0, 0, 1, 1], [], []>} : vector<8x8xf32>, vector<8x128xf32>, vector<8x128xf32> -> vector<8x128xf32>
    %c0_62 = arith.constant 0 : index
    %c256_63 = arith.constant 256 : index
    %100 = vector.load %arg15[%c0_62, %c256_63] : memref<8x512xf32, #tpu.memory_space<vmem>>, vector<8x128xf32>
    %101 = vector.broadcast %86 : vector<8x1xf32> to vector<8x128xf32>
    %102 = arith.mulf %101, %100 : vector<8x128xf32>
    %103 = arith.addf %102, %99 : vector<8x128xf32>
    %c0_64 = arith.constant 0 : index
    %c256_65 = arith.constant 256 : index
    %104 = vector.load %arg15[%c0_64, %c256_65] : memref<8x512xf32, #tpu.memory_space<vmem>>, vector<8x128xf32>
    tpu.vector_store %arg15[%c0_64, %c256_65], %103 {strides = array<i32>} : memref<8x512xf32, #tpu.memory_space<vmem>>, vector<8x128xf32>,
    %c2_66 = arith.constant 2 : index
    %c0_67 = arith.constant 0 : index
    %c0_68 = arith.constant 0 : index
    %105 = vector.load %arg13[%c2_66, %c0_67, %c0_68] : memref<4x8x1xf32, #tpu.memory_space<vmem>>, vector<1x8x1xf32>
    %106 = vector.shape_cast %105 : vector<1x8x1xf32> to vector<8x1xf32>
    %107 = vector.shape_cast %84 : vector<8x1xf32> to vector<1x8x1xf32>
    tpu.vector_store %arg13[%c2_66, %c0_67, %c0_68], %107 {strides = array<i32>} : memref<4x8x1xf32, #tpu.memory_space<vmem>>, vector<1x8x1xf32>,
    %c0_69 = arith.constant 0 : index
    %c384 = arith.constant 384 : index
    %108 = vector.load %arg12[%c0_69, %c384] : memref<8x512xf32, #tpu.memory_space<vmem>>, vector<8x128xf32>
    %109 = vector.extract_strided_slice %10 {offsets = [0, 384], sizes = [8, 128], strides = [1, 1]} : vector<8x512xf32> to vector<8x128xf32>
    %110 = vector.extract_strided_slice %11 {offsets = [0, 384], sizes = [8, 128], strides = [1, 1]} : vector<8x512xf32> to vector<8x128xf32>
    %cst_70 = arith.constant dense<0.000000e+00> : vector<8x8xf32>
    %111 = tpu.matmul %108, %109, %cst_70 {dimension_numbers = #tpu.dot_dimension_numbers<[1], [1], [0], [0], [0, 0, 1, 0], [], []>} : vector<8x128xf32>, vector<8x128xf32>, vector<8x8xf32> -> vector<8x8xf32>
    %c3 = arith.constant 3 : index
    %c0_71 = arith.constant 0 : index
    %c0_72 = arith.constant 0 : index
    %112 = vector.load %arg13[%c3, %c0_71, %c0_72] : memref<4x8x1xf32, #tpu.memory_space<vmem>>, vector<1x8x1xf32>
    %113 = vector.shape_cast %112 : vector<1x8x1xf32> to vector<8x1xf32>
    %cst_73 = arith.constant dense<0xFF800000> : vector<8xf32>
    %114 = vector.multi_reduction <maximumf>, %111, %cst_73 [1] : vector<8x8xf32> to vector<8xf32>
    %115 = vector.shape_cast %114 : vector<8xf32> to vector<8x1xf32>
    %116 = arith.maximumf %113, %115 : vector<8x1xf32>
    %117 = arith.subf %113, %116 : vector<8x1xf32>
    %118 = math.exp %117 : vector<8x1xf32>
    %119 = vector.broadcast %116 : vector<8x1xf32> to vector<8x8xf32>
    %120 = arith.subf %111, %119 : vector<8x8xf32>
    %121 = math.exp %120 : vector<8x8xf32>
    %c3_74 = arith.constant 3 : index
    %c0_75 = arith.constant 0 : index
    %c0_76 = arith.constant 0 : index
    %122 = vector.load %arg14[%c3_74, %c0_75, %c0_76] : memref<4x8x1xf32, #tpu.memory_space<vmem>>, vector<1x8x1xf32>
    %123 = vector.shape_cast %122 : vector<1x8x1xf32> to vector<8x1xf32>
    %124 = arith.mulf %118, %123 : vector<8x1xf32>
    %cst_77 = arith.constant dense<0.000000e+00> : vector<8xf32>
    %125 = vector.multi_reduction <add>, %121, %cst_77 [1] : vector<8x8xf32> to vector<8xf32>
    %126 = vector.shape_cast %125 : vector<8xf32> to vector<8x1xf32>
    %127 = arith.addf %124, %126 : vector<8x1xf32>
    %c3_78 = arith.constant 3 : index
    %c0_79 = arith.constant 0 : index
    %c0_80 = arith.constant 0 : index
    %128 = vector.load %arg14[%c3_78, %c0_79, %c0_80] : memref<4x8x1xf32, #tpu.memory_space<vmem>>, vector<1x8x1xf32>
    %129 = vector.shape_cast %128 : vector<1x8x1xf32> to vector<8x1xf32>
    %130 = vector.shape_cast %127 : vector<8x1xf32> to vector<1x8x1xf32>
    tpu.vector_store %arg14[%c3_78, %c0_79, %c0_80], %130 {strides = array<i32>} : memref<4x8x1xf32, #tpu.memory_space<vmem>>, vector<1x8x1xf32>,
    %cst_81 = arith.constant dense<0.000000e+00> : vector<8x128xf32>
    %131 = tpu.matmul %121, %110, %cst_81 {dimension_numbers = #tpu.dot_dimension_numbers<[1], [0], [0], [1], [0, 0, 1, 1], [], []>} : vector<8x8xf32>, vector<8x128xf32>, vector<8x128xf32> -> vector<8x128xf32>
    %c0_82 = arith.constant 0 : index
    %c384_83 = arith.constant 384 : index
    %132 = vector.load %arg15[%c0_82, %c384_83] : memref<8x512xf32, #tpu.memory_space<vmem>>, vector<8x128xf32>
    %133 = vector.broadcast %118 : vector<8x1xf32> to vector<8x128xf32>
    %134 = arith.mulf %133, %132 : vector<8x128xf32>
    %135 = arith.addf %134, %131 : vector<8x128xf32>
    %c0_84 = arith.constant 0 : index
    %c384_85 = arith.constant 384 : index
    %136 = vector.load %arg15[%c0_84, %c384_85] : memref<8x512xf32, #tpu.memory_space<vmem>>, vector<8x128xf32>
    tpu.vector_store %arg15[%c0_84, %c384_85], %135 {strides = array<i32>} : memref<8x512xf32, #tpu.memory_space<vmem>>, vector<8x128xf32>,
    %c3_86 = arith.constant 3 : index
    %c0_87 = arith.constant 0 : index
    %c0_88 = arith.constant 0 : index
    %137 = vector.load %arg13[%c3_86, %c0_87, %c0_88] : memref<4x8x1xf32, #tpu.memory_space<vmem>>, vector<1x8x1xf32>
    %138 = vector.shape_cast %137 : vector<1x8x1xf32> to vector<8x1xf32>
    %139 = vector.shape_cast %116 : vector<8x1xf32> to vector<1x8x1xf32>
    tpu.vector_store %arg13[%c3_86, %c0_87, %c0_88], %139 {strides = array<i32>} : memref<4x8x1xf32, #tpu.memory_space<vmem>>, vector<1x8x1xf32>,
    %c0_i32_89 = arith.constant 0 : i32
    %140 = arith.cmpi eq, %arg2, %c0_i32_89 : i32
    %141 = arith.extui %140 : i1 to i32
    %c0_i32_90 = arith.constant 0 : i32
    %142 = arith.cmpi ne, %141, %c0_i32_90 : i32
    scf.if %142 {
      %c0_91 = arith.constant 0 : index
      %c0_92 = arith.constant 0 : index
      %c0_93 = arith.constant 0 : index
      %143 = vector.load %arg14[%c0_91, %c0_92, %c0_93] : memref<4x8x1xf32, #tpu.memory_space<vmem>>, vector<1x8x1xf32>
      %144 = vector.shape_cast %143 : vector<1x8x1xf32> to vector<8x1xf32>
      %145 = tpu.reciprocal %144 {approx = true} : vector<8x1xf32> -> vector<8x1xf32>
      %c0_94 = arith.constant 0 : index
      %c0_95 = arith.constant 0 : index
      %146 = vector.load %arg15[%c0_94, %c0_95] : memref<8x512xf32, #tpu.memory_space<vmem>>, vector<8x128xf32>
      %147 = vector.broadcast %145 : vector<8x1xf32> to vector<8x128xf32>
      %148 = arith.mulf %146, %147 : vector<8x128xf32>
      %c0_96 = arith.constant 0 : index
      %c0_97 = arith.constant 0 : index
      %149 = vector.load %arg15[%c0_96, %c0_97] : memref<8x512xf32, #tpu.memory_space<vmem>>, vector<8x128xf32>
      tpu.vector_store %arg15[%c0_96, %c0_97], %148 {strides = array<i32>} : memref<8x512xf32, #tpu.memory_space<vmem>>, vector<8x128xf32>,
      %c1_98 = arith.constant 1 : index
      %c0_99 = arith.constant 0 : index
      %c0_100 = arith.constant 0 : index
      %150 = vector.load %arg14[%c1_98, %c0_99, %c0_100] : memref<4x8x1xf32, #tpu.memory_space<vmem>>, vector<1x8x1xf32>
      %151 = vector.shape_cast %150 : vector<1x8x1xf32> to vector<8x1xf32>
      %152 = tpu.reciprocal %151 {approx = true} : vector<8x1xf32> -> vector<8x1xf32>
      %c0_101 = arith.constant 0 : index
      %c128_102 = arith.constant 128 : index
      %153 = vector.load %arg15[%c0_101, %c128_102] : memref<8x512xf32, #tpu.memory_space<vmem>>, vector<8x128xf32>
      %154 = vector.broadcast %152 : vector<8x1xf32> to vector<8x128xf32>
      %155 = arith.mulf %153, %154 : vector<8x128xf32>
      %c0_103 = arith.constant 0 : index
      %c128_104 = arith.constant 128 : index
      %156 = vector.load %arg15[%c0_103, %c128_104] : memref<8x512xf32, #tpu.memory_space<vmem>>, vector<8x128xf32>
      tpu.vector_store %arg15[%c0_103, %c128_104], %155 {strides = array<i32>} : memref<8x512xf32, #tpu.memory_space<vmem>>, vector<8x128xf32>,
      %c2_105 = arith.constant 2 : index
      %c0_106 = arith.constant 0 : index
      %c0_107 = arith.constant 0 : index
      %157 = vector.load %arg14[%c2_105, %c0_106, %c0_107] : memref<4x8x1xf32, #tpu.memory_space<vmem>>, vector<1x8x1xf32>
      %158 = vector.shape_cast %157 : vector<1x8x1xf32> to vector<8x1xf32>
      %159 = tpu.reciprocal %158 {approx = true} : vector<8x1xf32> -> vector<8x1xf32>
      %c0_108 = arith.constant 0 : index
      %c256_109 = arith.constant 256 : index
      %160 = vector.load %arg15[%c0_108, %c256_109] : memref<8x512xf32, #tpu.memory_space<vmem>>, vector<8x128xf32>
      %161 = vector.broadcast %159 : vector<8x1xf32> to vector<8x128xf32>
      %162 = arith.mulf %160, %161 : vector<8x128xf32>
      %c0_110 = arith.constant 0 : index
      %c256_111 = arith.constant 256 : index
      %163 = vector.load %arg15[%c0_110, %c256_111] : memref<8x512xf32, #tpu.memory_space<vmem>>, vector<8x128xf32>
      tpu.vector_store %arg15[%c0_110, %c256_111], %162 {strides = array<i32>} : memref<8x512xf32, #tpu.memory_space<vmem>>, vector<8x128xf32>,
      %c3_112 = arith.constant 3 : index
      %c0_113 = arith.constant 0 : index
      %c0_114 = arith.constant 0 : index
      %164 = vector.load %arg14[%c3_112, %c0_113, %c0_114] : memref<4x8x1xf32, #tpu.memory_space<vmem>>, vector<1x8x1xf32>
      %165 = vector.shape_cast %164 : vector<1x8x1xf32> to vector<8x1xf32>
      %166 = tpu.reciprocal %165 {approx = true} : vector<8x1xf32> -> vector<8x1xf32>
      %c0_115 = arith.constant 0 : index
      %c384_116 = arith.constant 384 : index
      %167 = vector.load %arg15[%c0_115, %c384_116] : memref<8x512xf32, #tpu.memory_space<vmem>>, vector<8x128xf32>
      %168 = vector.broadcast %166 : vector<8x1xf32> to vector<8x128xf32>
      %169 = arith.mulf %167, %168 : vector<8x128xf32>
      %c0_117 = arith.constant 0 : index
      %c384_118 = arith.constant 384 : index
      %170 = vector.load %arg15[%c0_117, %c384_118] : memref<8x512xf32, #tpu.memory_space<vmem>>, vector<8x128xf32>
      tpu.vector_store %arg15[%c0_117, %c384_118], %169 {strides = array<i32>} : memref<8x512xf32, #tpu.memory_space<vmem>>, vector<8x128xf32>,
      %c0_119 = arith.constant 0 : index
      %c0_120 = arith.constant 0 : index
      %171 = vector.load %arg15[%c0_119, %c0_120] : memref<8x512xf32, #tpu.memory_space<vmem>>, vector<8x512xf32>
      %c0_121 = arith.constant 0 : index
      %c0_122 = arith.constant 0 : index
      %172 = vector.load %arg9[%c0_121, %c0_122] : memref<512x128xf32, #tpu.memory_space<vmem>>, vector<512x128xf32>
      %cst_123 = arith.constant dense<0.000000e+00> : vector<8x128xf32>
      %173 = tpu.matmul %171, %172, %cst_123 {dimension_numbers = #tpu.dot_dimension_numbers<[1], [0], [0], [1], [0, 0, 1, 1], [], []>} : vector<8x512xf32>, vector<512x128xf32>, vector<8x128xf32> -> vector<8x128xf32>
      %c0_124 = arith.constant 0 : index
      %c0_125 = arith.constant 0 : index
      %174 = vector.load %arg10[%c0_124, %c0_125] : memref<1x128xf32, #tpu.memory_space<vmem>>, vector<1x128xf32>
      %175 = vector.broadcast %174 : vector<1x128xf32> to vector<8x128xf32>
      %176 = arith.addf %173, %175 : vector<8x128xf32>
      %c0_126 = arith.constant 0 : index
      %c0_127 = arith.constant 0 : index
      %c0_128 = arith.constant 0 : index
      %177 = vector.load %arg11[%c0_126, %c0_127, %c0_128] : memref<1x8x128xf32, #tpu.memory_space<vmem>>, vector<1x8x128xf32>
      %178 = vector.shape_cast %177 : vector<1x8x128xf32> to vector<8x128xf32>
      %179 = vector.shape_cast %176 : vector<8x128xf32> to vector<1x8x128xf32>
      tpu.vector_store %arg11[%c0_126, %c0_127, %c0_128], %179 {strides = array<i32>} : memref<1x8x128xf32, #tpu.memory_space<vmem>>, vector<1x8x128xf32>,
    } else {
    }
    return
  }
  func.func @transform_0(%arg0: i32, %arg1: i32, %arg2: i32) -> (i32, i32, i32) {
    %c0_i32 = arith.constant 0 : i32
    %c0_i32_0 = arith.constant 0 : i32
    return %arg0, %arg1, %c0_i32 : i32, i32, i32
  }
  func.func @transform_1(%arg0: i32, %arg1: i32, %arg2: i32) -> (i32, i32, i32) {
    %c0_i32 = arith.constant 0 : i32
    %c0_i32_0 = arith.constant 0 : i32
    return %arg0, %arg2, %c0_i32 : i32, i32, i32
  }
  func.func @transform_2(%arg0: i32, %arg1: i32, %arg2: i32) -> (i32, i32) {
    %c0_i32 = arith.constant 0 : i32
    %c0_i32_0 = arith.constant 0 : i32
    %c0_i32_1 = arith.constant 0 : i32
    return %c0_i32, %c0_i32_0 : i32, i32
  }
  func.func @transform_3(%arg0: i32, %arg1: i32, %arg2: i32) -> (i32, i32) {
    %c0_i32 = arith.constant 0 : i32
    %c0_i32_0 = arith.constant 0 : i32
    %c0_i32_1 = arith.constant 0 : i32
    return %c0_i32, %c0_i32_0 : i32, i32
  }
  func.func @transform_4(%arg0: i32, %arg1: i32, %arg2: i32) -> (i32, i32) {
    %c0_i32 = arith.constant 0 : i32
    %c0_i32_0 = arith.constant 0 : i32
    %c0_i32_1 = arith.constant 0 : i32
    return %c0_i32, %c0_i32_0 : i32, i32
  }
  func.func @transform_5(%arg0: i32, %arg1: i32, %arg2: i32) -> (i32, i32) {
    %c0_i32 = arith.constant 0 : i32
    %c0_i32_0 = arith.constant 0 : i32
    %c0_i32_1 = arith.constant 0 : i32
    return %c0_i32, %c0_i32_0 : i32, i32
  }
  func.func @transform_6(%arg0: i32, %arg1: i32, %arg2: i32) -> (i32, i32) {
    %c0_i32 = arith.constant 0 : i32
    %c0_i32_0 = arith.constant 0 : i32
    %c0_i32_1 = arith.constant 0 : i32
    return %c0_i32, %c0_i32_0 : i32, i32
  }
  func.func @transform_7(%arg0: i32, %arg1: i32, %arg2: i32) -> (i32, i32) {
    %c0_i32 = arith.constant 0 : i32
    %c0_i32_0 = arith.constant 0 : i32
    %c0_i32_1 = arith.constant 0 : i32
    return %c0_i32, %c0_i32_0 : i32, i32
  }
  func.func @transform_8(%arg0: i32, %arg1: i32, %arg2: i32) -> (i32, i32, i32) {
    %c0_i32 = arith.constant 0 : i32
    %c0_i32_0 = arith.constant 0 : i32
    return %arg0, %arg1, %c0_i32 : i32, i32, i32
  }
}

</mosaic_0001>

<llo_original>
// kernel: tpu_custom_call.1
$region0: #{tpu_custom_call.1}
  #allocation0 [shape = 'u32[]', space=smem, size = 0x4, offset = 0x4, fixed_abs, tag = 'smem constant byte address 0x4 - core index']
  #allocation1 [shape = 'u32[144,128]{1,0:T(1,128)}', space=vmem, size = 0x12000, scoped, tag = 'internal scratch']
  #allocation2 [shape = 'f32[8,512]{1,0:T(8,128)}', space=vmem, size = 0x4000, scoped, tag = 'scratch operand']
  #allocation3 [shape = 'f32[4,8,1]{2,1,0:T(8,128)}', space=vmem, size = 0x4000, scoped, tag = 'scratch operand']
  #allocation4 [shape = 'f32[4,8,1]{2,1,0:T(8,128)}', space=vmem, size = 0x4000, scoped, tag = 'scratch operand']
  #allocation5 [shape = 'f32[8,512]{1,0:T(8,128)}', space=vmem, size = 0x4000, scoped, tag = 'scratch operand']
  %s0 = inlined_call_operand.hbm [shape: f32[2,8,128], index: 0, kind: input, shape index: {}]
  %s1 = inlined_call_operand.hbm [shape: f32[2,8,128], index: 1, kind: input, shape index: {}]
  %s2 = inlined_call_operand.hbm [shape: f32[128,512], index: 2, kind: input, shape index: {}]
  %s3 = inlined_call_operand.vmem [shape: f32[1,512], index: 3, kind: input, shape index: {}]
  %s4 = inlined_call_operand.hbm [shape: f32[128,1024], index: 4, kind: input, shape index: {}]
  %s5 = inlined_call_operand.vmem [shape: f32[1,1024], index: 5, kind: input, shape index: {}]
  %s6 = inlined_call_operand.hbm [shape: f32[512,128], index: 6, kind: input, shape index: {}]
  %s7 = inlined_call_operand.vmem [shape: f32[1,128], index: 7, kind: input, shape index: {}]
  %s8 = inlined_call_operand.hbm [shape: f32[2,8,128], index: 8, kind: output, shape index: {}]
  %s9 = sld [smem:[#allocation0]]
  $region93: #{tpu_custom_call.1} parent=0
    _
  %s11 = ssub.s32 1, %s9
  %s12 = scalar_select 0, %s11, %s9
  $region1: #{tpu_custom_call.1} parent=0
    #allocation6 [shape = 'u8[8192]{0}', space=vmem, size = 0x2000, scoped, tag = 'input window, operand 0']
    #allocation7 [shape = 's32[2]{0}', space=sflag, size = 0x8, scoped, tag = 'scoped memory for tpu_custom_call.1']
    #allocation8 [shape = 's32[2]{0}', space=sflag, size = 0x8, scoped, tag = 'scoped memory for tpu_custom_call.1']
    #allocation9 [shape = 'u8[8192]{0}', space=vmem, size = 0x2000, scoped, tag = 'input window, operand 1']
    #allocation10 [shape = 's32[2]{0}', space=sflag, size = 0x8, scoped, tag = 'scoped memory for tpu_custom_call.1']
    #allocation11 [shape = 'u8[262144]{0}', space=vmem, size = 0x40000, scoped, tag = 'input window, operand 2, single buffered']
    #allocation12 [shape = 'u8[524288]{0}', space=vmem, size = 0x80000, scoped, tag = 'input window, operand 4, single buffered']
    #allocation13 [shape = 's32[1]{0}', space=sflag, size = 0x4, scoped, tag = 'scoped memory for tpu_custom_call.1']
    #allocation14 [shape = 'u8[262144]{0}', space=vmem, size = 0x40000, scoped, tag = 'input window, operand 6, single buffered']
    #allocation15 [shape = 'u8[8192]{0}', space=vmem, size = 0x2000, scoped, tag = 'output window, operand 0']
    %13 = vsyncpa [#allocation7], 0
    %s14 = scalar_lea.sflag [#allocation7], 1
    %15 = vsyncpa %s14, 0
    %16 = vsyncpa [#allocation10], 0
    %s17 = scalar_lea.sflag [#allocation10], 1
    %18 = vsyncpa %s17, 0
    %19 = vsyncpa [#allocation13], 0
    %20 = vsyncpa [#allocation8], 0
    %s21 = scalar_lea.sflag [#allocation8], 1
    %22 = vsyncpa %s21, 0
    loop: start=0, step=1, limit=4
    $region2: #{tpu_custom_call.1} parent=1 // loop_pre_header
      _
    $region3: #{tpu_custom_call.1} parent=1 // loop_header
      %s24 = sphi 0, %s28
      %p25 = scmp.ge.s32.totalorder %s24, 4
      %s31 = sphi 0, %s50
      %s32 = sphi 0, %s46
      %s33 = sphi 0, %s42
      %s34 = sphi 0, %s31
      %s35 = sphi 0, %s32
      %s36 = sphi 0, %s33
      %s37 = sphi 0, %s34
      %s38 = sphi 0, %s35
      %s39 = sphi 0, %s36
      %s55 = sphi 0, %s57
      %s58 = sphi 0, %s55
      %s59 = sphi 0, %s58
      %s75 = sphi 0, %s59
      %s83 = sphi 0, %s85
      %s86 = sphi 0, %s83
      %s87 = sphi 0, %s86
      %s103 = sphi 0, %s87
      %s107 = sphi 0, %s107
      %s109 = sphi 0, %s107
      %s110 = sphi 0, %s109
      %s124 = sphi 0, %s110
      %s128 = sphi 0, %s128
      %s130 = sphi 0, %s128
      %s131 = sphi 0, %s130
      %s145 = sphi 0, %s131
      %s149 = sphi 0, %s149
      %s151 = sphi 0, %s149
      %s152 = sphi 0, %s151
      %s166 = sphi 0, %s152
      %s170 = sphi 0, %s170
      %s172 = sphi 0, %s170
      %s173 = sphi 0, %s172
      %s187 = sphi 0, %s173
      %s191 = sphi 0, %s191
      %s193 = sphi 0, %s191
      %s194 = sphi 0, %s193
      %s208 = sphi 0, %s194
      %s212 = sphi 0, %s212
      %s214 = sphi 0, %s212
      %s215 = sphi 0, %s214
      %s229 = sphi 0, %s215
      %s237 = sphi 0, %s239
      %s240 = sphi 0, %s237
      %s241 = sphi 0, %s240
      %s257 = sphi 0, %s241
    $region4: #{tpu_custom_call.1} parent=1 // loop_header_branch
      %27 = sbr.rel (%p25) target = $region8
    $region5: #{tpu_custom_call.1} parent=1 // loop_body
      %s29 = ssub.s32 %s24, 1
      %s30 = ssub.s32 %s24, 2
      %s40 = sadd.s32 1, %s33
      %p41 = scmp.ge.s32.totalorder %s40, 1
      %s42 = scalar_select %p41, 0, %s40
      %s43 = sadd.s32 1, %s32
      %s44 = scalar_select %p41, %s43, %s32
      %p45 = scmp.ge.s32.totalorder %s44, 1
      %s46 = scalar_select %p45, 0, %s44
      %s47 = sadd.s32 1, %s31
      %s48 = scalar_select %p45, %s47, %s31
      %p49 = scmp.ge.s32.totalorder %s48, 2
      %s50 = scalar_select %p49, 0, %s48
      %s51 = ssub.s32 %s31, %s50
      %s52 = ssub.s32 %s32, %s46
      %s53 = sor.u32 %s51, %s52
      %p54 = scmp.eq.s32.totalorder %s53, 0
      %s56 = sadd.s32 %s55, 1
      %s57 = scalar_select %p54, %s55, %s56
      %p60 = pneg %p54
      %p61 = scmp.eq.s32.totalorder %s24, 1
      %p62 = por %p60, %p61
      %p63 = scmp.ne.s32.totalorder %s55, %s58
      %p64 = scmp.eq.s32.totalorder %s24, 0
      %p65 = por %p63, %p64
      %p66 = scmp.ne.s32.totalorder %s55, %s58
      %p67 = scmp.eq.s32.totalorder %s29, 1
      %p68 = por %p66, %p67
      %p69 = scmp.ne.s32.totalorder %s58, %s59
      %p70 = scmp.eq.s32.totalorder %s29, 0
      %p71 = por %p69, %p70
      %p72 = scmp.ne.s32.totalorder %s58, %s59
      %p73 = scmp.eq.s32.totalorder %s30, 1
      %p74 = por %p72, %p73
      %p76 = scmp.ne.s32.totalorder %s59, %s75
      %p77 = scmp.eq.s32.totalorder %s30, 0
      %p78 = por %p76, %p77
      %s79 = ssub.s32 %s31, %s50
      %s80 = ssub.s32 %s33, %s42
      %s81 = sor.u32 %s79, %s80
      %p82 = scmp.eq.s32.totalorder %s81, 0
      %s84 = sadd.s32 %s83, 1
      %s85 = scalar_select %p82, %s83, %s84
      %p88 = pneg %p82
      %p89 = scmp.eq.s32.totalorder %s24, 1
      %p90 = por %p88, %p89
      %p91 = scmp.ne.s32.totalorder %s83, %s86
      %p92 = scmp.eq.s32.totalorder %s24, 0
      %p93 = por %p91, %p92
      %p94 = scmp.ne.s32.totalorder %s83, %s86
      %p95 = scmp.eq.s32.totalorder %s29, 1
      %p96 = por %p94, %p95
      %p97 = scmp.ne.s32.totalorder %s86, %s87
      %p98 = scmp.eq.s32.totalorder %s29, 0
      %p99 = por %p97, %p98
      %p100 = scmp.ne.s32.totalorder %s86, %s87
      %p101 = scmp.eq.s32.totalorder %s30, 1
      %p102 = por %p100, %p101
      %p104 = scmp.ne.s32.totalorder %s87, %s103
      %p105 = scmp.eq.s32.totalorder %s30, 0
      %p106 = por %p104, %p105
      %s108 = sadd.s32 %s107, 1
      %p111 = scmp.eq.s32.totalorder %s24, 1
      %p112 = scmp.ne.s32.totalorder %s107, %s109
      %p113 = scmp.eq.s32.totalorder %s24, 0
      %p114 = por %p112, %p113
      %p115 = scmp.ne.s32.totalorder %s107, %s109
      %p116 = scmp.eq.s32.totalorder %s29, 1
      %p117 = por %p115, %p116
      %p118 = scmp.ne.s32.totalorder %s109, %s110
      %p119 = scmp.eq.s32.totalorder %s29, 0
      %p120 = por %p118, %p119
      %p121 = scmp.ne.s32.totalorder %s109, %s110
      %p122 = scmp.eq.s32.totalorder %s30, 1
      %p123 = por %p121, %p122
      %p125 = scmp.ne.s32.totalorder %s110, %s124
      %p126 = scmp.eq.s32.totalorder %s30, 0
      %p127 = por %p125, %p126
      %s129 = sadd.s32 %s128, 1
      %p132 = scmp.eq.s32.totalorder %s24, 1
      %p133 = scmp.ne.s32.totalorder %s128, %s130
      %p134 = scmp.eq.s32.totalorder %s24, 0
      %p135 = por %p133, %p134
      %p136 = scmp.ne.s32.totalorder %s128, %s130
      %p137 = scmp.eq.s32.totalorder %s29, 1
      %p138 = por %p136, %p137
      %p139 = scmp.ne.s32.totalorder %s130, %s131
      %p140 = scmp.eq.s32.totalorder %s29, 0
      %p141 = por %p139, %p140
      %p142 = scmp.ne.s32.totalorder %s130, %s131
      %p143 = scmp.eq.s32.totalorder %s30, 1
      %p144 = por %p142, %p143
      %p146 = scmp.ne.s32.totalorder %s131, %s145
      %p147 = scmp.eq.s32.totalorder %s30, 0
      %p148 = por %p146, %p147
      %s150 = sadd.s32 %s149, 1
      %p153 = scmp.eq.s32.totalorder %s24, 1
      %p154 = scmp.ne.s32.totalorder %s149, %s151
      %p155 = scmp.eq.s32.totalorder %s24, 0
      %p156 = por %p154, %p155
      %p157 = scmp.ne.s32.totalorder %s149, %s151
      %p158 = scmp.eq.s32.totalorder %s29, 1
      %p159 = por %p157, %p158
      %p160 = scmp.ne.s32.totalorder %s151, %s152
      %p161 = scmp.eq.s32.totalorder %s29, 0
      %p162 = por %p160, %p161
      %p163 = scmp.ne.s32.totalorder %s151, %s152
      %p164 = scmp.eq.s32.totalorder %s30, 1
      %p165 = por %p163, %p164
      %p167 = scmp.ne.s32.totalorder %s152, %s166
      %p168 = scmp.eq.s32.totalorder %s30, 0
      %p169 = por %p167, %p168
      %s171 = sadd.s32 %s170, 1
      %p174 = scmp.eq.s32.totalorder %s24, 1
      %p175 = scmp.ne.s32.totalorder %s170, %s172
      %p176 = scmp.eq.s32.totalorder %s24, 0
      %p177 = por %p175, %p176
      %p178 = scmp.ne.s32.totalorder %s170, %s172
      %p179 = scmp.eq.s32.totalorder %s29, 1
      %p180 = por %p178, %p179
      %p181 = scmp.ne.s32.totalorder %s172, %s173
      %p182 = scmp.eq.s32.totalorder %s29, 0
      %p183 = por %p181, %p182
      %p184 = scmp.ne.s32.totalorder %s172, %s173
      %p185 = scmp.eq.s32.totalorder %s30, 1
      %p186 = por %p184, %p185
      %p188 = scmp.ne.s32.totalorder %s173, %s187
      %p189 = scmp.eq.s32.totalorder %s30, 0
      %p190 = por %p188, %p189
      %s192 = sadd.s32 %s191, 1
      %p195 = scmp.eq.s32.totalorder %s24, 1
      %p196 = scmp.ne.s32.totalorder %s191, %s193
      %p197 = scmp.eq.s32.totalorder %s24, 0
      %p198 = por %p196, %p197
      %p199 = scmp.ne.s32.totalorder %s191, %s193
      %p200 = scmp.eq.s32.totalorder %s29, 1
      %p201 = por %p199, %p200
      %p202 = scmp.ne.s32.totalorder %s193, %s194
      %p203 = scmp.eq.s32.totalorder %s29, 0
      %p204 = por %p202, %p203
      %p205 = scmp.ne.s32.totalorder %s193, %s194
      %p206 = scmp.eq.s32.totalorder %s30, 1
      %p207 = por %p205, %p206
      %p209 = scmp.ne.s32.totalorder %s194, %s208
      %p210 = scmp.eq.s32.totalorder %s30, 0
      %p211 = por %p209, %p210
      %s213 = sadd.s32 %s212, 1
      %p216 = scmp.eq.s32.totalorder %s24, 1
      %p217 = scmp.ne.s32.totalorder %s212, %s214
      %p218 = scmp.eq.s32.totalorder %s24, 0
      %p219 = por %p217, %p218
      %p220 = scmp.ne.s32.totalorder %s212, %s214
      %p221 = scmp.eq.s32.totalorder %s29, 1
      %p222 = por %p220, %p221
      %p223 = scmp.ne.s32.totalorder %s214, %s215
      %p224 = scmp.eq.s32.totalorder %s29, 0
      %p225 = por %p223, %p224
      %p226 = scmp.ne.s32.totalorder %s214, %s215
      %p227 = scmp.eq.s32.totalorder %s30, 1
      %p228 = por %p226, %p227
      %p230 = scmp.ne.s32.totalorder %s215, %s229
      %p231 = scmp.eq.s32.totalorder %s30, 0
      %p232 = por %p230, %p231
      %s233 = ssub.s32 %s31, %s50
      %s234 = ssub.s32 %s32, %s46
      %s235 = sor.u32 %s233, %s234
      %p236 = scmp.eq.s32.totalorder %s235, 0
      %s238 = sadd.s32 %s237, 1
      %s239 = scalar_select %p236, %s237, %s238
      %p242 = pneg %p236
      %p243 = scmp.eq.s32.totalorder %s24, 1
      %p244 = por %p242, %p243
      %p245 = scmp.ne.s32.totalorder %s237, %s240
      %p246 = scmp.eq.s32.totalorder %s24, 0
      %p247 = por %p245, %p246
      %p248 = scmp.ne.s32.totalorder %s237, %s240
      %p249 = scmp.eq.s32.totalorder %s29, 1
      %p250 = por %p248, %p249
      %p251 = scmp.ne.s32.totalorder %s240, %s241
      %p252 = scmp.eq.s32.totalorder %s29, 0
      %p253 = por %p251, %p252
      %p254 = scmp.ne.s32.totalorder %s240, %s241
      %p255 = scmp.eq.s32.totalorder %s30, 1
      %p256 = por %p254, %p255
      %p258 = scmp.ne.s32.totalorder %s241, %s257
      %p259 = scmp.eq.s32.totalorder %s30, 0
      %p260 = por %p258, %p259
      %p261 = scmp.le.s32.totalorder 1, %s24
      %p262 = scmp.lt.s32.totalorder %s24, 3
      %p263 = pnand %p261, %p262
      %p264 = pneg %p263
      // Predicated region
      $region9: #{tpu_custom_call.1} parent=5 // pred_check
        _
      $region10: #{tpu_custom_call.1} parent=5 // pred_check_branch
        %266 = sbr.rel (%p263) target = $region12
      $region11: #{tpu_custom_call.1} parent=5 // pred_region
        %s267 = ssub.s32 %s24, 1
        // Predicated region
        $region13: #{tpu_custom_call.1} parent=11 // pred_check
          %p268 = pneg %p120
        $region14: #{tpu_custom_call.1} parent=11 // pred_check_branch
          %270 = sbr.rel (%p268) target = $region16
        $region15: #{tpu_custom_call.1} parent=11 // pred_region
          %s272 = ssub.s32 8192, 8192
          %273 = vsyncadd [#allocation10], %s272
          %s274 = sshll.u32 [#allocation11], 4
          %s275 = int_to_ptr.vmem [resolvable:$true] %s274
          %280 = dma.hbm_to_vmem [thread:$0]  %s2, 8192, %s275, [#allocation10], 512, 512, 32
        $region16: #{tpu_custom_call.1} parent=11 // pred_fallthru
          _
        // Predicated region
        $region17: #{tpu_custom_call.1} parent=11 // pred_check
          %p281 = pneg %p141
        $region18: #{tpu_custom_call.1} parent=11 // pred_check_branch
          %283 = sbr.rel (%p281) target = $region20
        $region19: #{tpu_custom_call.1} parent=11 // pred_region
          _
        $region20: #{tpu_custom_call.1} parent=11 // pred_fallthru
          _
        // Predicated region
        $region21: #{tpu_custom_call.1} parent=11 // pred_check
          %p284 = pneg %p162
        $region22: #{tpu_custom_call.1} parent=11 // pred_check_branch
          %286 = sbr.rel (%p284) target = $region24
        $region23: #{tpu_custom_call.1} parent=11 // pred_region
          %s288 = ssub.s32 16384, 16384
          %289 = vsyncadd [#allocation13], %s288
          %s290 = sshll.u32 [#allocation12], 4
          %s291 = int_to_ptr.vmem [resolvable:$true] %s290
          %296 = dma.hbm_to_vmem [thread:$0]  %s4, 16384, %s291, [#allocation13], 1024, 1024, 64
        $region24: #{tpu_custom_call.1} parent=11 // pred_fallthru
          _
        // Predicated region
        $region25: #{tpu_custom_call.1} parent=11 // pred_check
          %p297 = pneg %p183
        $region26: #{tpu_custom_call.1} parent=11 // pred_check_branch
          %299 = sbr.rel (%p297) target = $region28
        $region27: #{tpu_custom_call.1} parent=11 // pred_region
          _
        $region28: #{tpu_custom_call.1} parent=11 // pred_fallthru
          _
        // Predicated region
        $region29: #{tpu_custom_call.1} parent=11 // pred_check
          %p300 = pneg %p204
        $region30: #{tpu_custom_call.1} parent=11 // pred_check_branch
          %302 = sbr.rel (%p300) target = $region32
        $region31: #{tpu_custom_call.1} parent=11 // pred_region
          %s304 = ssub.s32 8192, 8192
          %305 = vsyncadd [#allocation13], %s304
          %s306 = sshll.u32 [#allocation14], 4
          %s307 = int_to_ptr.vmem [resolvable:$true] %s306
          %312 = dma.hbm_to_vmem [thread:$0]  %s6, 8192, %s307, [#allocation13], 128, 128, 8
        $region32: #{tpu_custom_call.1} parent=11 // pred_fallthru
          _
        // Predicated region
        $region33: #{tpu_custom_call.1} parent=11 // pred_check
          %p313 = pneg %p225
        $region34: #{tpu_custom_call.1} parent=11 // pred_check_branch
          %315 = sbr.rel (%p313) target = $region36
        $region35: #{tpu_custom_call.1} parent=11 // pred_region
          _
        $region36: #{tpu_custom_call.1} parent=11 // pred_fallthru
          _
      $region12: #{tpu_custom_call.1} parent=5 // pred_fallthru
        _
      %p316 = scmp.lt.s32.totalorder %s24, 2
      // Predicated region
      $region37: #{tpu_custom_call.1} parent=5 // pred_check
        %p317 = pneg %p316
      $region38: #{tpu_custom_call.1} parent=5 // pred_check_branch
        %319 = sbr.rel (%p317) target = $region40
      $region39: #{tpu_custom_call.1} parent=5 // pred_region
        // Predicated region
        $region41: #{tpu_custom_call.1} parent=39 // pred_check
          %p320 = pneg %p65
        $region42: #{tpu_custom_call.1} parent=39 // pred_check_branch
          %322 = sbr.rel (%p320) target = $region44
        $region43: #{tpu_custom_call.1} parent=39 // pred_region
          %s323 = sand.u32 %s55, 1
          %s324 = scalar_lea.sflag [#allocation7], %s323
          %s325 = sand.u32 %s55, 1
          %s326 = smul.addr %s325, 8
          %s327 = scalar_lea.vmem [#allocation6], %s326
          %s329 = ssub.s32 128, 128
          %330 = vsyncadd %s324, %s329
          %s331 = sadd.s32 %s32, %s31
          %s332 = smul.addr %s331, 128
          %s333 = scalar_lea.hbm %s0, %s332
          %s335 = sshll.u32 %s327, 4
          %s336 = int_to_ptr.vmem [resolvable:$true] %s335
          %338 = dma.hbm_to_vmem [thread:$0]  %s333, 128, %s336, %s324
        $region44: #{tpu_custom_call.1} parent=39 // pred_fallthru
          _
        // Predicated region
        $region45: #{tpu_custom_call.1} parent=39 // pred_check
          %p339 = pneg %p93
        $region46: #{tpu_custom_call.1} parent=39 // pred_check_branch
          %341 = sbr.rel (%p339) target = $region48
        $region47: #{tpu_custom_call.1} parent=39 // pred_region
          %s342 = sand.u32 %s24, 1
          %s343 = scalar_lea.sflag [#allocation10], %s342
          %s344 = sand.u32 %s83, 1
          %s345 = smul.addr %s344, 8
          %s346 = scalar_lea.vmem [#allocation9], %s345
          %s348 = ssub.s32 128, 128
          %349 = vsyncadd %s343, %s348
          %s350 = sadd.s32 %s33, %s31
          %s351 = smul.addr %s350, 128
          %s352 = scalar_lea.hbm %s1, %s351
          %s354 = sshll.u32 %s346, 4
          %s355 = int_to_ptr.vmem [resolvable:$true] %s354
          %357 = dma.hbm_to_vmem [thread:$0]  %s352, 128, %s355, %s343
        $region48: #{tpu_custom_call.1} parent=39 // pred_fallthru
          _
      $region40: #{tpu_custom_call.1} parent=5 // pred_fallthru
        _
      %p358 = scmp.le.s32.totalorder 1, %s24
      %p359 = scmp.lt.s32.totalorder %s24, 3
      %p360 = pnand %p358, %p359
      %p361 = pneg %p360
      // Predicated region
      $region49: #{tpu_custom_call.1} parent=5 // pred_check
        _
      $region50: #{tpu_custom_call.1} parent=5 // pred_check_branch
        %363 = sbr.rel (%p360) target = $region52
      $region51: #{tpu_custom_call.1} parent=5 // pred_region
        %s364 = ssub.s32 %s24, 1
        %s365 = sand.u32 %s58, 1
        %s366 = scalar_lea.sflag [#allocation7], %s365
        %s367 = sand.u32 %s58, 1
        %s368 = smul.addr %s367, 8
        %s369 = scalar_lea.vmem [#allocation6], %s368
        // Predicated region
        $region53: #{tpu_custom_call.1} parent=51 // pred_check
          %p370 = pneg %p71
        $region54: #{tpu_custom_call.1} parent=51 // pred_check_branch
          %372 = sbr.rel (%p370) target = $region56
        $region55: #{tpu_custom_call.1} parent=51 // pred_region
          %373 = dma.done %s366, 128
        $region56: #{tpu_custom_call.1} parent=51 // pred_fallthru
          _
        %s374 = sand.u32 %s29, 1
        %s375 = scalar_lea.sflag [#allocation10], %s374
        %s376 = sand.u32 %s86, 1
        %s377 = smul.addr %s376, 8
        %s378 = scalar_lea.vmem [#allocation9], %s377
        // Predicated region
        $region57: #{tpu_custom_call.1} parent=51 // pred_check
          %p379 = pneg %p99
        $region58: #{tpu_custom_call.1} parent=51 // pred_check_branch
          %381 = sbr.rel (%p379) target = $region60
        $region59: #{tpu_custom_call.1} parent=51 // pred_region
          %382 = dma.done %s375, 128
        $region60: #{tpu_custom_call.1} parent=51 // pred_fallthru
          _
        // Predicated region
        $region61: #{tpu_custom_call.1} parent=51 // pred_check
          %p383 = pneg %p120
        $region62: #{tpu_custom_call.1} parent=51 // pred_check_branch
          %385 = sbr.rel (%p383) target = $region64
        $region63: #{tpu_custom_call.1} parent=51 // pred_region
          %386 = dma.done [#allocation10], 8192
        $region64: #{tpu_custom_call.1} parent=51 // pred_fallthru
          _
        // Predicated region
        $region65: #{tpu_custom_call.1} parent=51 // pred_check
          %p387 = pneg %p162
        $region66: #{tpu_custom_call.1} parent=51 // pred_check_branch
          %389 = sbr.rel (%p387) target = $region68
        $region67: #{tpu_custom_call.1} parent=51 // pred_region
          %390 = dma.done [#allocation13], 16384
        $region68: #{tpu_custom_call.1} parent=51 // pred_fallthru
          _
        // Predicated region
        $region69: #{tpu_custom_call.1} parent=51 // pred_check
          %p391 = pneg %p204
        $region70: #{tpu_custom_call.1} parent=51 // pred_check_branch
          %393 = sbr.rel (%p391) target = $region72
        $region71: #{tpu_custom_call.1} parent=51 // pred_region
          %394 = dma.done [#allocation13], 8192
        $region72: #{tpu_custom_call.1} parent=51 // pred_fallthru
          _
        %s395 = sand.u32 %s58, 1
        %s396 = scalar_lea.sflag [#allocation7], %s395
        %s397 = sand.u32 %s58, 1
        %s398 = smul.addr %s397, 8
        %s399 = scalar_lea.vmem [#allocation6], %s398
        %p400 = pneg %p71
        %p401 = pneg %p68
        %s402 = sand.u32 %s29, 1
        %s403 = scalar_lea.sflag [#allocation10], %s402
        %s404 = sand.u32 %s86, 1
        %s405 = smul.addr %s404, 8
        %s406 = scalar_lea.vmem [#allocation9], %s405
        %p407 = pneg %p99
        %p408 = pneg %p96
        %p409 = pneg %p120
        %p410 = pneg %p117
        %p411 = pneg %p141
        %p412 = pneg %p138
        %p413 = pneg %p162
        %p414 = pneg %p159
        %p415 = pneg %p183
        %p416 = pneg %p180
        %p417 = pneg %p204
        %p418 = pneg %p201
        %p419 = pneg %p225
        %p420 = pneg %p222
        %p421 = pneg %p253
        %p422 = pneg %p250
        %s423 = sand.u32 %s240, 1
        %s424 = scalar_lea.sflag [#allocation8], %s423
        %s425 = sand.u32 %s240, 1
        %s426 = smul.addr %s425, 8
        %s427 = scalar_lea.vmem [#allocation15], %s426
        %p428 = scmp.eq.s32.totalorder %s36, 0
        // Predicated region
        $region73: #{tpu_custom_call.1} parent=51 // pred_check
          %p429 = pneg %p428
        $region74: #{tpu_custom_call.1} parent=51 // pred_check_branch
          %431 = sbr.rel (%p429) target = $region76
        $region75: #{tpu_custom_call.1} parent=51 // pred_region
          %v432 = vld [vmem:[%s369] sm:$0xff]
          %v433 = vld [vmem:[#allocation11] sm:$0xff]
          %v434 = vld [vmem:[#allocation11 + $0x8] sm:$0xff]
          %v435 = vld [vmem:[#allocation11 + $0x10] sm:$0xff]
          %v436 = vld [vmem:[#allocation11 + $0x18] sm:$0xff]
          %v437 = vld [vmem:[#allocation11 + $0x20] sm:$0xff]
          %v438 = vld [vmem:[#allocation11 + $0x28] sm:$0xff]
          %v439 = vld [vmem:[#allocation11 + $0x30] sm:$0xff]
          %v440 = vld [vmem:[#allocation11 + $0x38] sm:$0xff]
          %v441 = vld [vmem:[#allocation11 + $0x40] sm:$0xff]
          %v442 = vld [vmem:[#allocation11 + $0x48] sm:$0xff]
          %v443 = vld [vmem:[#allocation11 + $0x50] sm:$0xff]
          %v444 = vld [vmem:[#allocation11 + $0x58] sm:$0xff]
          %v445 = vld [vmem:[#allocation11 + $0x60] sm:$0xff]
          %v446 = vld [vmem:[#allocation11 + $0x68] sm:$0xff]
          %v447 = vld [vmem:[#allocation11 + $0x70] sm:$0xff]
          %v448 = vld [vmem:[#allocation11 + $0x78] sm:$0xff]
          %v449 = vld [vmem:[#allocation11 + $0x80] sm:$0xff]
          %v450 = vld [vmem:[#allocation11 + $0x88] sm:$0xff]
          %v451 = vld [vmem:[#allocation11 + $0x90] sm:$0xff]
          %v452 = vld [vmem:[#allocation11 + $0x98] sm:$0xff]
          %v453 = vld [vmem:[#allocation11 + $0xa0] sm:$0xff]
          %v454 = vld [vmem:[#allocation11 + $0xa8] sm:$0xff]
          %v455 = vld [vmem:[#allocation11 + $0xb0] sm:$0xff]
          %v456 = vld [vmem:[#allocation11 + $0xb8] sm:$0xff]
          %v457 = vld [vmem:[#allocation11 + $0xc0] sm:$0xff]
          %v458 = vld [vmem:[#allocation11 + $0xc8] sm:$0xff]
          %v459 = vld [vmem:[#allocation11 + $0xd0] sm:$0xff]
          %v460 = vld [vmem:[#allocation11 + $0xd8] sm:$0xff]
          %v461 = vld [vmem:[#allocation11 + $0xe0] sm:$0xff]
          %v462 = vld [vmem:[#allocation11 + $0xe8] sm:$0xff]
          %v463 = vld [vmem:[#allocation11 + $0xf0] sm:$0xff]
          %v464 = vld [vmem:[#allocation11 + $0xf8] sm:$0xff]
          %v465 = vld [vmem:[#allocation11 + $0x100] sm:$0xff]
          %v466 = vld [vmem:[#allocation11 + $0x108] sm:$0xff]
          %v467 = vld [vmem:[#allocation11 + $0x110] sm:$0xff]
          %v468 = vld [vmem:[#allocation11 + $0x118] sm:$0xff]
          %v469 = vld [vmem:[#allocation11 + $0x120] sm:$0xff]
          %v470 = vld [vmem:[#allocation11 + $0x128] sm:$0xff]
          %v471 = vld [vmem:[#allocation11 + $0x130] sm:$0xff]
          %v472 = vld [vmem:[#allocation11 + $0x138] sm:$0xff]
          %v473 = vld [vmem:[#allocation11 + $0x140] sm:$0xff]
          %v474 = vld [vmem:[#allocation11 + $0x148] sm:$0xff]
          %v475 = vld [vmem:[#allocation11 + $0x150] sm:$0xff]
          %v476 = vld [vmem:[#allocation11 + $0x158] sm:$0xff]
          %v477 = vld [vmem:[#allocation11 + $0x160] sm:$0xff]
          %v478 = vld [vmem:[#allocation11 + $0x168] sm:$0xff]
          %v479 = vld [vmem:[#allocation11 + $0x170] sm:$0xff]
          %v480 = vld [vmem:[#allocation11 + $0x178] sm:$0xff]
          %v481 = vld [vmem:[#allocation11 + $0x180] sm:$0xff]
          %v482 = vld [vmem:[#allocation11 + $0x188] sm:$0xff]
          %v483 = vld [vmem:[#allocation11 + $0x190] sm:$0xff]
          %v484 = vld [vmem:[#allocation11 + $0x198] sm:$0xff]
          %v485 = vld [vmem:[#allocation11 + $0x1a0] sm:$0xff]
          %v486 = vld [vmem:[#allocation11 + $0x1a8] sm:$0xff]
          %v487 = vld [vmem:[#allocation11 + $0x1b0] sm:$0xff]
          %v488 = vld [vmem:[#allocation11 + $0x1b8] sm:$0xff]
          %v489 = vld [vmem:[#allocation11 + $0x1c0] sm:$0xff]
          %v490 = vld [vmem:[#allocation11 + $0x1c8] sm:$0xff]
          %v491 = vld [vmem:[#allocation11 + $0x1d0] sm:$0xff]
          %v492 = vld [vmem:[#allocation11 + $0x1d8] sm:$0xff]
          %v493 = vld [vmem:[#allocation11 + $0x1e0] sm:$0xff]
          %v494 = vld [vmem:[#allocation11 + $0x1e8] sm:$0xff]
          %v495 = vld [vmem:[#allocation11 + $0x1f0] sm:$0xff]
          %v496 = vld [vmem:[#allocation11 + $0x1f8] sm:$0xff]
          %v497 = vld [vmem:[%s3] sm:$0xf]
          %v499 = vlaneseq
          %v500 = vshrl.u32 %v499, 7
          %v501 = vsub.s32 0, %v500
          %v502 = vrot.slane %v497, %v501
          %v503 = vlaneseq
          %v504 = vshrl.u32 %v503, 7
          %v505 = vsub.s32 1, %v504
          %v506 = vrot.slane %v497, %v505
          %v507 = vlaneseq
          %v508 = vshrl.u32 %v507, 7
          %v509 = vsub.s32 2, %v508
          %v510 = vrot.slane %v497, %v509
          %v511 = vlaneseq
          %v512 = vshrl.u32 %v511, 7
          %v513 = vsub.s32 3, %v512
          %v514 = vrot.slane %v497, %v513
          %519 = vmatprep.subr.mxu0 %v434
          %520 = vmatpush1.msra.mxu0 %v433
          %521 = vmatprep.subr.mxu0 %v438
          %522 = vmatpush1.msra.mxu0 %v437
          %523 = vmatprep.subr.mxu0 %v442
          %524 = vmatpush1.msra.mxu0 %v441
          %525 = vmatprep.subr.mxu0 %v446
          %526 = vmatpush1.msra.mxu0 %v445
          %527 = vmatprep.subr.mxu0 %v450
          %528 = vmatpush1.msra.mxu0 %v449
          %529 = vmatprep.subr.mxu0 %v454
          %530 = vmatpush1.msra.mxu0 %v453
          %531 = vmatprep.subr.mxu0 %v458
          %532 = vmatpush1.msra.mxu0 %v457
          %533 = vmatprep.subr.mxu0 %v462
          %534 = vmatpush1.msra.mxu0 %v461
          %535 = vmatprep.subr.mxu0 %v466
          %536 = vmatpush1.msra.mxu0 %v465
          %537 = vmatprep.subr.mxu0 %v470
          %538 = vmatpush1.msra.mxu0 %v469
          %539 = vmatprep.subr.mxu0 %v474
          %540 = vmatpush1.msra.mxu0 %v473
          %541 = vmatprep.subr.mxu0 %v478
          %542 = vmatpush1.msra.mxu0 %v477
          %543 = vmatprep.subr.mxu0 %v482
          %544 = vmatpush1.msra.mxu0 %v481
          %545 = vmatprep.subr.mxu0 %v486
          %546 = vmatpush1.msra.mxu0 %v485
          %547 = vmatprep.subr.mxu0 %v490
          %548 = vmatpush1.msra.mxu0 %v489
          %549 = vmatprep.subr.mxu0 %v494
          %550 = vmatpush1.msra.mxu0 %v493
          %551 = vmatprep.subr.mxu0 0.0
          %552 = vmatpush1.msra.mxu0 0.0
          %553 = vmatprep.subr.mxu0 0.0
          %554 = vmatpush1.msra.mxu0 0.0
          %555 = vmatprep.subr.mxu0 0.0
          %556 = vmatpush1.msra.mxu0 0.0
          %557 = vmatprep.subr.mxu0 0.0
          %558 = vmatpush1.msra.mxu0 0.0
          %559 = vmatprep.subr.mxu0 0.0
          %560 = vmatpush1.msra.mxu0 0.0
          %561 = vmatprep.subr.mxu0 0.0
          %562 = vmatpush1.msra.mxu0 0.0
          %563 = vmatprep.subr.mxu0 0.0
          %564 = vmatpush1.msra.mxu0 0.0
          %565 = vmatprep.subr.mxu0 0.0
          %566 = vmatpush1.msra.mxu0 0.0
          %567 = vmatprep.subr.mxu0 0.0
          %568 = vmatpush1.msra.mxu0 0.0
          %569 = vmatprep.subr.mxu0 0.0
          %570 = vmatpush1.msra.mxu0 0.0
          %571 = vmatprep.subr.mxu0 0.0
          %572 = vmatpush1.msra.mxu0 0.0
          %573 = vmatprep.subr.mxu0 0.0
          %574 = vmatpush1.msra.mxu0 0.0
          %575 = vmatprep.subr.mxu0 0.0
          %576 = vmatpush1.msra.mxu0 0.0
          %577 = vmatprep.subr.mxu0 0.0
          %578 = vmatpush1.msra.mxu0 0.0
          %579 = vmatprep.subr.mxu0 0.0
          %580 = vmatpush1.msra.mxu0 0.0
          %581 = vmatprep.subr.mxu0 0.0
          %582 = vmatpush1.msra.mxu0 0.0
          %583 = vmatprep.mubr.f32.mxu0 0.0
          %584 = vmatmul.mubr.f32.gmra.mrb[0].mxu0 %v432
          %v585 = vpop.f32.mrb[0].mxu0
          %v586 = vadd.f32 %v502, %v585
          %v587 = vpop.f32.mrb[0].mxu0
          %v588 = vadd.f32 %v506, %v587
          %589 = vdwg.mxu0
          %590 = vmatprep.subr.mxu0 %v436
          %591 = vmatpush1.msra.mxu0 %v435
          %592 = vmatprep.subr.mxu0 %v440
          %593 = vmatpush1.msra.mxu0 %v439
          %594 = vmatprep.subr.mxu0 %v444
          %595 = vmatpush1.msra.mxu0 %v443
          %596 = vmatprep.subr.mxu0 %v448
          %597 = vmatpush1.msra.mxu0 %v447
          %598 = vmatprep.subr.mxu0 %v452
          %599 = vmatpush1.msra.mxu0 %v451
          %600 = vmatprep.subr.mxu0 %v456
          %601 = vmatpush1.msra.mxu0 %v455
          %602 = vmatprep.subr.mxu0 %v460
          %603 = vmatpush1.msra.mxu0 %v459
          %604 = vmatprep.subr.mxu0 %v464
          %605 = vmatpush1.msra.mxu0 %v463
          %606 = vmatprep.subr.mxu0 %v468
          %607 = vmatpush1.msra.mxu0 %v467
          %608 = vmatprep.subr.mxu0 %v472
          %609 = vmatpush1.msra.mxu0 %v471
          %610 = vmatprep.subr.mxu0 %v476
          %611 = vmatpush1.msra.mxu0 %v475
          %612 = vmatprep.subr.mxu0 %v480
          %613 = vmatpush1.msra.mxu0 %v479
          %614 = vmatprep.subr.mxu0 %v484
          %615 = vmatpush1.msra.mxu0 %v483
          %616 = vmatprep.subr.mxu0 %v488
          %617 = vmatpush1.msra.mxu0 %v487
          %618 = vmatprep.subr.mxu0 %v492
          %619 = vmatpush1.msra.mxu0 %v491
          %620 = vmatprep.subr.mxu0 %v496
          %621 = vmatpush1.msra.mxu0 %v495
          %622 = vmatprep.subr.mxu0 0.0
          %623 = vmatpush1.msra.mxu0 0.0
          %624 = vmatprep.subr.mxu0 0.0
          %625 = vmatpush1.msra.mxu0 0.0
          %626 = vmatprep.subr.mxu0 0.0
          %627 = vmatpush1.msra.mxu0 0.0
          %628 = vmatprep.subr.mxu0 0.0
          %629 = vmatpush1.msra.mxu0 0.0
          %630 = vmatprep.subr.mxu0 0.0
          %631 = vmatpush1.msra.mxu0 0.0
          %632 = vmatprep.subr.mxu0 0.0
          %633 = vmatpush1.msra.mxu0 0.0
          %634 = vmatprep.subr.mxu0 0.0
          %635 = vmatpush1.msra.mxu0 0.0
          %636 = vmatprep.subr.mxu0 0.0
          %637 = vmatpush1.msra.mxu0 0.0
          %638 = vmatprep.subr.mxu0 0.0
          %639 = vmatpush1.msra.mxu0 0.0
          %640 = vmatprep.subr.mxu0 0.0
          %641 = vmatpush1.msra.mxu0 0.0
          %642 = vmatprep.subr.mxu0 0.0
          %643 = vmatpush1.msra.mxu0 0.0
          %644 = vmatprep.subr.mxu0 0.0
          %645 = vmatpush1.msra.mxu0 0.0
          %646 = vmatprep.subr.mxu0 0.0
          %647 = vmatpush1.msra.mxu0 0.0
          %648 = vmatprep.subr.mxu0 0.0
          %649 = vmatpush1.msra.mxu0 0.0
          %650 = vmatprep.subr.mxu0 0.0
          %651 = vmatpush1.msra.mxu0 0.0
          %652 = vmatprep.subr.mxu0 0.0
          %653 = vmatpush1.msra.mxu0 0.0
          %654 = vmatprep.mubr.f32.mxu0 0.0
          %655 = vmatmul.mubr.f32.gmra.mrb[0].mxu0 %v432
          %v656 = vpop.f32.mrb[0].mxu0
          %v657 = vadd.f32 %v510, %v656
          %v658 = vpop.f32.mrb[0].mxu0
          %v659 = vadd.f32 %v514, %v658
          %660 = vdwg.mxu0
          %661 = vst [vmem:[#allocation2] sm:$0xff] %v586
          %662 = vst [vmem:[#allocation2 + $0x8] sm:$0xff] %v588
          %663 = vst [vmem:[#allocation2 + $0x10] sm:$0xff] %v657
          %664 = vst [vmem:[#allocation2 + $0x18] sm:$0xff] %v659
          %vm665 = vcmask 7168
          %666 = vst.msk [vmem:[#allocation3] sm:$0xff] %vm665, -inf
          %667 = vst.msk [vmem:[#allocation3 + $0x8] sm:$0xff] %vm665, -inf
          %668 = vst.msk [vmem:[#allocation3 + $0x10] sm:$0xff] %vm665, -inf
          %669 = vst.msk [vmem:[#allocation3 + $0x18] sm:$0xff] %vm665, -inf
          %670 = vst.msk [vmem:[#allocation4] sm:$0xff] %vm665, 0.0
          %671 = vst.msk [vmem:[#allocation4 + $0x8] sm:$0xff] %vm665, 0.0
          %672 = vst.msk [vmem:[#allocation4 + $0x10] sm:$0xff] %vm665, 0.0
          %673 = vst.msk [vmem:[#allocation4 + $0x18] sm:$0xff] %vm665, 0.0
          %674 = vst [vmem:[#allocation5] sm:$0xff] 0.0
          %675 = vst [vmem:[#allocation5 + $0x8] sm:$0xff] 0.0
          %676 = vst [vmem:[#allocation5 + $0x10] sm:$0xff] 0.0
          %677 = vst [vmem:[#allocation5 + $0x18] sm:$0xff] 0.0
        $region76: #{tpu_custom_call.1} parent=51 // pred_fallthru
          _
        %v678 = vld [vmem:[%s378] sm:$0xff]
        %v679 = vld [vmem:[#allocation12] sm:$0xff]
        %v680 = vld [vmem:[#allocation12 + $0x8] sm:$0xff]
        %v681 = vld [vmem:[#allocation12 + $0x10] sm:$0xff]
        %v682 = vld [vmem:[#allocation12 + $0x18] sm:$0xff]
        %v683 = vld [vmem:[#allocation12 + $0x20] sm:$0xff]
        %v684 = vld [vmem:[#allocation12 + $0x28] sm:$0xff]
        %v685 = vld [vmem:[#allocation12 + $0x30] sm:$0xff]
        %v686 = vld [vmem:[#allocation12 + $0x38] sm:$0xff]
        %v687 = vld [vmem:[#allocation12 + $0x40] sm:$0xff]
        %v688 = vld [vmem:[#allocation12 + $0x48] sm:$0xff]
        %v689 = vld [vmem:[#allocation12 + $0x50] sm:$0xff]
        %v690 = vld [vmem:[#allocation12 + $0x58] sm:$0xff]
        %v691 = vld [vmem:[#allocation12 + $0x60] sm:$0xff]
        %v692 = vld [vmem:[#allocation12 + $0x68] sm:$0xff]
        %v693 = vld [vmem:[#allocation12 + $0x70] sm:$0xff]
        %v694 = vld [vmem:[#allocation12 + $0x78] sm:$0xff]
        %v695 = vld [vmem:[#allocation12 + $0x80] sm:$0xff]
        %v696 = vld [vmem:[#allocation12 + $0x88] sm:$0xff]
        %v697 = vld [vmem:[#allocation12 + $0x90] sm:$0xff]
        %v698 = vld [vmem:[#allocation12 + $0x98] sm:$0xff]
        %v699 = vld [vmem:[#allocation12 + $0xa0] sm:$0xff]
        %v700 = vld [vmem:[#allocation12 + $0xa8] sm:$0xff]
        %v701 = vld [vmem:[#allocation12 + $0xb0] sm:$0xff]
        %v702 = vld [vmem:[#allocation12 + $0xb8] sm:$0xff]
        %v703 = vld [vmem:[#allocation12 + $0xc0] sm:$0xff]
        %v704 = vld [vmem:[#allocation12 + $0xc8] sm:$0xff]
        %v705 = vld [vmem:[#allocation12 + $0xd0] sm:$0xff]
        %v706 = vld [vmem:[#allocation12 + $0xd8] sm:$0xff]
        %v707 = vld [vmem:[#allocation12 + $0xe0] sm:$0xff]
        %v708 = vld [vmem:[#allocation12 + $0xe8] sm:$0xff]
        %v709 = vld [vmem:[#allocation12 + $0xf0] sm:$0xff]
        %v710 = vld [vmem:[#allocation12 + $0xf8] sm:$0xff]
        %v711 = vld [vmem:[#allocation12 + $0x100] sm:$0xff]
        %v712 = vld [vmem:[#allocation12 + $0x108] sm:$0xff]
        %v713 = vld [vmem:[#allocation12 + $0x110] sm:$0xff]
        %v714 = vld [vmem:[#allocation12 + $0x118] sm:$0xff]
        %v715 = vld [vmem:[#allocation12 + $0x120] sm:$0xff]
        %v716 = vld [vmem:[#allocation12 + $0x128] sm:$0xff]
        %v717 = vld [vmem:[#allocation12 + $0x130] sm:$0xff]
        %v718 = vld [vmem:[#allocation12 + $0x138] sm:$0xff]
        %v719 = vld [vmem:[#allocation12 + $0x140] sm:$0xff]
        %v720 = vld [vmem:[#allocation12 + $0x148] sm:$0xff]
        %v721 = vld [vmem:[#allocation12 + $0x150] sm:$0xff]
        %v722 = vld [vmem:[#allocation12 + $0x158] sm:$0xff]
        %v723 = vld [vmem:[#allocation12 + $0x160] sm:$0xff]
        %v724 = vld [vmem:[#allocation12 + $0x168] sm:$0xff]
        %v725 = vld [vmem:[#allocation12 + $0x170] sm:$0xff]
        %v726 = vld [vmem:[#allocation12 + $0x178] sm:$0xff]
        %v727 = vld [vmem:[#allocation12 + $0x180] sm:$0xff]
        %v728 = vld [vmem:[#allocation12 + $0x188] sm:$0xff]
        %v729 = vld [vmem:[#allocation12 + $0x190] sm:$0xff]
        %v730 = vld [vmem:[#allocation12 + $0x198] sm:$0xff]
        %v731 = vld [vmem:[#allocation12 + $0x1a0] sm:$0xff]
        %v732 = vld [vmem:[#allocation12 + $0x1a8] sm:$0xff]
        %v733 = vld [vmem:[#allocation12 + $0x1b0] sm:$0xff]
        %v734 = vld [vmem:[#allocation12 + $0x1b8] sm:$0xff]
        %v735 = vld [vmem:[#allocation12 + $0x1c0] sm:$0xff]
        %v736 = vld [vmem:[#allocation12 + $0x1c8] sm:$0xff]
        %v737 = vld [vmem:[#allocation12 + $0x1d0] sm:$0xff]
        %v738 = vld [vmem:[#allocation12 + $0x1d8] sm:$0xff]
        %v739 = vld [vmem:[#allocation12 + $0x1e0] sm:$0xff]
        %v740 = vld [vmem:[#allocation12 + $0x1e8] sm:$0xff]
        %v741 = vld [vmem:[#allocation12 + $0x1f0] sm:$0xff]
        %v742 = vld [vmem:[#allocation12 + $0x1f8] sm:$0xff]
        %v743 = vld [vmem:[#allocation12 + $0x200] sm:$0xff]
        %v744 = vld [vmem:[#allocation12 + $0x208] sm:$0xff]
        %v745 = vld [vmem:[#allocation12 + $0x210] sm:$0xff]
        %v746 = vld [vmem:[#allocation12 + $0x218] sm:$0xff]
        %v747 = vld [vmem:[#allocation12 + $0x220] sm:$0xff]
        %v748 = vld [vmem:[#allocation12 + $0x228] sm:$0xff]
        %v749 = vld [vmem:[#allocation12 + $0x230] sm:$0xff]
        %v750 = vld [vmem:[#allocation12 + $0x238] sm:$0xff]
        %v751 = vld [vmem:[#allocation12 + $0x240] sm:$0xff]
        %v752 = vld [vmem:[#allocation12 + $0x248] sm:$0xff]
        %v753 = vld [vmem:[#allocation12 + $0x250] sm:$0xff]
        %v754 = vld [vmem:[#allocation12 + $0x258] sm:$0xff]
        %v755 = vld [vmem:[#allocation12 + $0x260] sm:$0xff]
        %v756 = vld [vmem:[#allocation12 + $0x268] sm:$0xff]
        %v757 = vld [vmem:[#allocation12 + $0x270] sm:$0xff]
        %v758 = vld [vmem:[#allocation12 + $0x278] sm:$0xff]
        %v759 = vld [vmem:[#allocation12 + $0x280] sm:$0xff]
        %v760 = vld [vmem:[#allocation12 + $0x288] sm:$0xff]
        %v761 = vld [vmem:[#allocation12 + $0x290] sm:$0xff]
        %v762 = vld [vmem:[#allocation12 + $0x298] sm:$0xff]
        %v763 = vld [vmem:[#allocation12 + $0x2a0] sm:$0xff]
        %v764 = vld [vmem:[#allocation12 + $0x2a8] sm:$0xff]
        %v765 = vld [vmem:[#allocation12 + $0x2b0] sm:$0xff]
        %v766 = vld [vmem:[#allocation12 + $0x2b8] sm:$0xff]
        %v767 = vld [vmem:[#allocation12 + $0x2c0] sm:$0xff]
        %v768 = vld [vmem:[#allocation12 + $0x2c8] sm:$0xff]
        %v769 = vld [vmem:[#allocation12 + $0x2d0] sm:$0xff]
        %v770 = vld [vmem:[#allocation12 + $0x2d8] sm:$0xff]
        %v771 = vld [vmem:[#allocation12 + $0x2e0] sm:$0xff]
        %v772 = vld [vmem:[#allocation12 + $0x2e8] sm:$0xff]
        %v773 = vld [vmem:[#allocation12 + $0x2f0] sm:$0xff]
        %v774 = vld [vmem:[#allocation12 + $0x2f8] sm:$0xff]
        %v775 = vld [vmem:[#allocation12 + $0x300] sm:$0xff]
        %v776 = vld [vmem:[#allocation12 + $0x308] sm:$0xff]
        %v777 = vld [vmem:[#allocation12 + $0x310] sm:$0xff]
        %v778 = vld [vmem:[#allocation12 + $0x318] sm:$0xff]
        %v779 = vld [vmem:[#allocation12 + $0x320] sm:$0xff]
        %v780 = vld [vmem:[#allocation12 + $0x328] sm:$0xff]
        %v781 = vld [vmem:[#allocation12 + $0x330] sm:$0xff]
        %v782 = vld [vmem:[#allocation12 + $0x338] sm:$0xff]
        %v783 = vld [vmem:[#allocation12 + $0x340] sm:$0xff]
        %v784 = vld [vmem:[#allocation12 + $0x348] sm:$0xff]
        %v785 = vld [vmem:[#allocation12 + $0x350] sm:$0xff]
        %v786 = vld [vmem:[#allocation12 + $0x358] sm:$0xff]
        %v787 = vld [vmem:[#allocation12 + $0x360] sm:$0xff]
        %v788 = vld [vmem:[#allocation12 + $0x368] sm:$0xff]
        %v789 = vld [vmem:[#allocation12 + $0x370] sm:$0xff]
        %v790 = vld [vmem:[#allocation12 + $0x378] sm:$0xff]
        %v791 = vld [vmem:[#allocation12 + $0x380] sm:$0xff]
        %v792 = vld [vmem:[#allocation12 + $0x388] sm:$0xff]
        %v793 = vld [vmem:[#allocation12 + $0x390] sm:$0xff]
        %v794 = vld [vmem:[#allocation12 + $0x398] sm:$0xff]
        %v795 = vld [vmem:[#allocation12 + $0x3a0] sm:$0xff]
        %v796 = vld [vmem:[#allocation12 + $0x3a8] sm:$0xff]
        %v797 = vld [vmem:[#allocation12 + $0x3b0] sm:$0xff]
        %v798 = vld [vmem:[#allocation12 + $0x3b8] sm:$0xff]
        %v799 = vld [vmem:[#allocation12 + $0x3c0] sm:$0xff]
        %v800 = vld [vmem:[#allocation12 + $0x3c8] sm:$0xff]
        %v801 = vld [vmem:[#allocation12 + $0x3d0] sm:$0xff]
        %v802 = vld [vmem:[#allocation12 + $0x3d8] sm:$0xff]
        %v803 = vld [vmem:[#allocation12 + $0x3e0] sm:$0xff]
        %v804 = vld [vmem:[#allocation12 + $0x3e8] sm:$0xff]
        %v805 = vld [vmem:[#allocation12 + $0x3f0] sm:$0xff]
        %v806 = vld [vmem:[#allocation12 + $0x3f8] sm:$0xff]
        %v807 = vld [vmem:[%s5] sm:$0xff]
        %v809 = vlaneseq
        %v810 = vshrl.u32 %v809, 7
        %v811 = vsub.s32 0, %v810
        %v812 = vrot.slane %v807, %v811
        %v813 = vlaneseq
        %v814 = vshrl.u32 %v813, 7
        %v815 = vsub.s32 1, %v814
        %v816 = vrot.slane %v807, %v815
        %v817 = vlaneseq
        %v818 = vshrl.u32 %v817, 7
        %v819 = vsub.s32 2, %v818
        %v820 = vrot.slane %v807, %v819
        %v821 = vlaneseq
        %v822 = vshrl.u32 %v821, 7
        %v823 = vsub.s32 3, %v822
        %v824 = vrot.slane %v807, %v823
        %v825 = vlaneseq
        %v826 = vshrl.u32 %v825, 7
        %v827 = vsub.s32 4, %v826
        %v828 = vrot.slane %v807, %v827
        %v829 = vlaneseq
        %v830 = vshrl.u32 %v829, 7
        %v831 = vsub.s32 5, %v830
        %v832 = vrot.slane %v807, %v831
        %v833 = vlaneseq
        %v834 = vshrl.u32 %v833, 7
        %v835 = vsub.s32 6, %v834
        %v836 = vrot.slane %v807, %v835
        %v837 = vlaneseq
        %v838 = vshrl.u32 %v837, 7
        %v839 = vsub.s32 7, %v838
        %v840 = vrot.slane %v807, %v839
        %849 = vmatprep.subr.mxu0 %v680
        %850 = vmatpush1.msra.mxu0 %v679
        %851 = vmatprep.subr.mxu0 %v688
        %852 = vmatpush1.msra.mxu0 %v687
        %853 = vmatprep.subr.mxu0 %v696
        %854 = vmatpush1.msra.mxu0 %v695
        %855 = vmatprep.subr.mxu0 %v704
        %856 = vmatpush1.msra.mxu0 %v703
        %857 = vmatprep.subr.mxu0 %v712
        %858 = vmatpush1.msra.mxu0 %v711
        %859 = vmatprep.subr.mxu0 %v720
        %860 = vmatpush1.msra.mxu0 %v719
        %861 = vmatprep.subr.mxu0 %v728
        %862 = vmatpush1.msra.mxu0 %v727
        %863 = vmatprep.subr.mxu0 %v736
        %864 = vmatpush1.msra.mxu0 %v735
        %865 = vmatprep.subr.mxu0 %v744
        %866 = vmatpush1.msra.mxu0 %v743
        %867 = vmatprep.subr.mxu0 %v752
        %868 = vmatpush1.msra.mxu0 %v751
        %869 = vmatprep.subr.mxu0 %v760
        %870 = vmatpush1.msra.mxu0 %v759
        %871 = vmatprep.subr.mxu0 %v768
        %872 = vmatpush1.msra.mxu0 %v767
        %873 = vmatprep.subr.mxu0 %v776
        %874 = vmatpush1.msra.mxu0 %v775
        %875 = vmatprep.subr.mxu0 %v784
        %876 = vmatpush1.msra.mxu0 %v783
        %877 = vmatprep.subr.mxu0 %v792
        %878 = vmatpush1.msra.mxu0 %v791
        %879 = vmatprep.subr.mxu0 %v800
        %880 = vmatpush1.msra.mxu0 %v799
        %881 = vmatprep.subr.mxu0 0.0
        %882 = vmatpush1.msra.mxu0 0.0
        %883 = vmatprep.subr.mxu0 0.0
        %884 = vmatpush1.msra.mxu0 0.0
        %885 = vmatprep.subr.mxu0 0.0
        %886 = vmatpush1.msra.mxu0 0.0
        %887 = vmatprep.subr.mxu0 0.0
        %888 = vmatpush1.msra.mxu0 0.0
        %889 = vmatprep.subr.mxu0 0.0
        %890 = vmatpush1.msra.mxu0 0.0
        %891 = vmatprep.subr.mxu0 0.0
        %892 = vmatpush1.msra.mxu0 0.0
        %893 = vmatprep.subr.mxu0 0.0
        %894 = vmatpush1.msra.mxu0 0.0
        %895 = vmatprep.subr.mxu0 0.0
        %896 = vmatpush1.msra.mxu0 0.0
        %897 = vmatprep.subr.mxu0 0.0
        %898 = vmatpush1.msra.mxu0 0.0
        %899 = vmatprep.subr.mxu0 0.0
        %900 = vmatpush1.msra.mxu0 0.0
        %901 = vmatprep.subr.mxu0 0.0
        %902 = vmatpush1.msra.mxu0 0.0
        %903 = vmatprep.subr.mxu0 0.0
        %904 = vmatpush1.msra.mxu0 0.0
        %905 = vmatprep.subr.mxu0 0.0
        %906 = vmatpush1.msra.mxu0 0.0
        %907 = vmatprep.subr.mxu0 0.0
        %908 = vmatpush1.msra.mxu0 0.0
        %909 = vmatprep.subr.mxu0 0.0
        %910 = vmatpush1.msra.mxu0 0.0
        %911 = vmatprep.subr.mxu0 0.0
        %912 = vmatpush1.msra.mxu0 0.0
        %913 = vmatprep.mubr.f32.mxu0 0.0
        %914 = vmatmul.mubr.f32.gmra.mrb[0].mxu0 %v678
        %v915 = vpop.f32.mrb[0].mxu0
        %v916 = vadd.f32 %v812, %v915
        %v917 = vpop.f32.mrb[0].mxu0
        %v918 = vadd.f32 %v816, %v917
        %919 = vdwg.mxu0
        %920 = vmatprep.subr.mxu0 %v682
        %921 = vmatpush1.msra.mxu0 %v681
        %922 = vmatprep.subr.mxu0 %v690
        %923 = vmatpush1.msra.mxu0 %v689
        %924 = vmatprep.subr.mxu0 %v698
        %925 = vmatpush1.msra.mxu0 %v697
        %926 = vmatprep.subr.mxu0 %v706
        %927 = vmatpush1.msra.mxu0 %v705
        %928 = vmatprep.subr.mxu0 %v714
        %929 = vmatpush1.msra.mxu0 %v713
        %930 = vmatprep.subr.mxu0 %v722
        %931 = vmatpush1.msra.mxu0 %v721
        %932 = vmatprep.subr.mxu0 %v730
        %933 = vmatpush1.msra.mxu0 %v729
        %934 = vmatprep.subr.mxu0 %v738
        %935 = vmatpush1.msra.mxu0 %v737
        %936 = vmatprep.subr.mxu0 %v746
        %937 = vmatpush1.msra.mxu0 %v745
        %938 = vmatprep.subr.mxu0 %v754
        %939 = vmatpush1.msra.mxu0 %v753
        %940 = vmatprep.subr.mxu0 %v762
        %941 = vmatpush1.msra.mxu0 %v761
        %942 = vmatprep.subr.mxu0 %v770
        %943 = vmatpush1.msra.mxu0 %v769
        %944 = vmatprep.subr.mxu0 %v778
        %945 = vmatpush1.msra.mxu0 %v777
        %946 = vmatprep.subr.mxu0 %v786
        %947 = vmatpush1.msra.mxu0 %v785
        %948 = vmatprep.subr.mxu0 %v794
        %949 = vmatpush1.msra.mxu0 %v793
        %950 = vmatprep.subr.mxu0 %v802
        %951 = vmatpush1.msra.mxu0 %v801
        %952 = vmatprep.subr.mxu0 0.0
        %953 = vmatpush1.msra.mxu0 0.0
        %954 = vmatprep.subr.mxu0 0.0
        %955 = vmatpush1.msra.mxu0 0.0
        %956 = vmatprep.subr.mxu0 0.0
        %957 = vmatpush1.msra.mxu0 0.0
        %958 = vmatprep.subr.mxu0 0.0
        %959 = vmatpush1.msra.mxu0 0.0
        %960 = vmatprep.subr.mxu0 0.0
        %961 = vmatpush1.msra.mxu0 0.0
        %962 = vmatprep.subr.mxu0 0.0
        %963 = vmatpush1.msra.mxu0 0.0
        %964 = vmatprep.subr.mxu0 0.0
        %965 = vmatpush1.msra.mxu0 0.0
        %966 = vmatprep.subr.mxu0 0.0
        %967 = vmatpush1.msra.mxu0 0.0
        %968 = vmatprep.subr.mxu0 0.0
        %969 = vmatpush1.msra.mxu0 0.0
        %970 = vmatprep.subr.mxu0 0.0
        %971 = vmatpush1.msra.mxu0 0.0
        %972 = vmatprep.subr.mxu0 0.0
        %973 = vmatpush1.msra.mxu0 0.0
        %974 = vmatprep.subr.mxu0 0.0
        %975 = vmatpush1.msra.mxu0 0.0
        %976 = vmatprep.subr.mxu0 0.0
        %977 = vmatpush1.msra.mxu0 0.0
        %978 = vmatprep.subr.mxu0 0.0
        %979 = vmatpush1.msra.mxu0 0.0
        %980 = vmatprep.subr.mxu0 0.0
        %981 = vmatpush1.msra.mxu0 0.0
        %982 = vmatprep.subr.mxu0 0.0
        %983 = vmatpush1.msra.mxu0 0.0
        %984 = vmatprep.mubr.f32.mxu0 0.0
        %985 = vmatmul.mubr.f32.gmra.mrb[0].mxu0 %v678
        %v986 = vpop.f32.mrb[0].mxu0
        %v987 = vadd.f32 %v820, %v986
        %v988 = vpop.f32.mrb[0].mxu0
        %v989 = vadd.f32 %v824, %v988
        %990 = vdwg.mxu0
        %991 = vmatprep.subr.mxu0 %v684
        %992 = vmatpush1.msra.mxu0 %v683
        %993 = vmatprep.subr.mxu0 %v692
        %994 = vmatpush1.msra.mxu0 %v691
        %995 = vmatprep.subr.mxu0 %v700
        %996 = vmatpush1.msra.mxu0 %v699
        %997 = vmatprep.subr.mxu0 %v708
        %998 = vmatpush1.msra.mxu0 %v707
        %999 = vmatprep.subr.mxu0 %v716
        %1000 = vmatpush1.msra.mxu0 %v715
        %1001 = vmatprep.subr.mxu0 %v724
        %1002 = vmatpush1.msra.mxu0 %v723
        %1003 = vmatprep.subr.mxu0 %v732
        %1004 = vmatpush1.msra.mxu0 %v731
        %1005 = vmatprep.subr.mxu0 %v740
        %1006 = vmatpush1.msra.mxu0 %v739
        %1007 = vmatprep.subr.mxu0 %v748
        %1008 = vmatpush1.msra.mxu0 %v747
        %1009 = vmatprep.subr.mxu0 %v756
        %1010 = vmatpush1.msra.mxu0 %v755
        %1011 = vmatprep.subr.mxu0 %v764
        %1012 = vmatpush1.msra.mxu0 %v763
        %1013 = vmatprep.subr.mxu0 %v772
        %1014 = vmatpush1.msra.mxu0 %v771
        %1015 = vmatprep.subr.mxu0 %v780
        %1016 = vmatpush1.msra.mxu0 %v779
        %1017 = vmatprep.subr.mxu0 %v788
        %1018 = vmatpush1.msra.mxu0 %v787
        %1019 = vmatprep.subr.mxu0 %v796
        %1020 = vmatpush1.msra.mxu0 %v795
        %1021 = vmatprep.subr.mxu0 %v804
        %1022 = vmatpush1.msra.mxu0 %v803
        %1023 = vmatprep.subr.mxu0 0.0
        %1024 = vmatpush1.msra.mxu0 0.0
        %1025 = vmatprep.subr.mxu0 0.0
        %1026 = vmatpush1.msra.mxu0 0.0
        %1027 = vmatprep.subr.mxu0 0.0
        %1028 = vmatpush1.msra.mxu0 0.0
        %1029 = vmatprep.subr.mxu0 0.0
        %1030 = vmatpush1.msra.mxu0 0.0
        %1031 = vmatprep.subr.mxu0 0.0
        %1032 = vmatpush1.msra.mxu0 0.0
        %1033 = vmatprep.subr.mxu0 0.0
        %1034 = vmatpush1.msra.mxu0 0.0
        %1035 = vmatprep.subr.mxu0 0.0
        %1036 = vmatpush1.msra.mxu0 0.0
        %1037 = vmatprep.subr.mxu0 0.0
        %1038 = vmatpush1.msra.mxu0 0.0
        %1039 = vmatprep.subr.mxu0 0.0
        %1040 = vmatpush1.msra.mxu0 0.0
        %1041 = vmatprep.subr.mxu0 0.0
        %1042 = vmatpush1.msra.mxu0 0.0
        %1043 = vmatprep.subr.mxu0 0.0
        %1044 = vmatpush1.msra.mxu0 0.0
        %1045 = vmatprep.subr.mxu0 0.0
        %1046 = vmatpush1.msra.mxu0 0.0
        %1047 = vmatprep.subr.mxu0 0.0
        %1048 = vmatpush1.msra.mxu0 0.0
        %1049 = vmatprep.subr.mxu0 0.0
        %1050 = vmatpush1.msra.mxu0 0.0
        %1051 = vmatprep.subr.mxu0 0.0
        %1052 = vmatpush1.msra.mxu0 0.0
        %1053 = vmatprep.subr.mxu0 0.0
        %1054 = vmatpush1.msra.mxu0 0.0
        %1055 = vmatprep.mubr.f32.mxu0 0.0
        %1056 = vmatmul.mubr.f32.gmra.mrb[0].mxu0 %v678
        %v1057 = vpop.f32.mrb[0].mxu0
        %v1058 = vadd.f32 %v828, %v1057
        %v1059 = vpop.f32.mrb[0].mxu0
        %v1060 = vadd.f32 %v832, %v1059
        %1061 = vdwg.mxu0
        %1062 = vmatprep.subr.mxu0 %v686
        %1063 = vmatpush1.msra.mxu0 %v685
        %1064 = vmatprep.subr.mxu0 %v694
        %1065 = vmatpush1.msra.mxu0 %v693
        %1066 = vmatprep.subr.mxu0 %v702
        %1067 = vmatpush1.msra.mxu0 %v701
        %1068 = vmatprep.subr.mxu0 %v710
        %1069 = vmatpush1.msra.mxu0 %v709
        %1070 = vmatprep.subr.mxu0 %v718
        %1071 = vmatpush1.msra.mxu0 %v717
        %1072 = vmatprep.subr.mxu0 %v726
        %1073 = vmatpush1.msra.mxu0 %v725
        %1074 = vmatprep.subr.mxu0 %v734
        %1075 = vmatpush1.msra.mxu0 %v733
        %1076 = vmatprep.subr.mxu0 %v742
        %1077 = vmatpush1.msra.mxu0 %v741
        %1078 = vmatprep.subr.mxu0 %v750
        %1079 = vmatpush1.msra.mxu0 %v749
        %1080 = vmatprep.subr.mxu0 %v758
        %1081 = vmatpush1.msra.mxu0 %v757
        %1082 = vmatprep.subr.mxu0 %v766
        %1083 = vmatpush1.msra.mxu0 %v765
        %1084 = vmatprep.subr.mxu0 %v774
        %1085 = vmatpush1.msra.mxu0 %v773
        %1086 = vmatprep.subr.mxu0 %v782
        %1087 = vmatpush1.msra.mxu0 %v781
        %1088 = vmatprep.subr.mxu0 %v790
        %1089 = vmatpush1.msra.mxu0 %v789
        %1090 = vmatprep.subr.mxu0 %v798
        %1091 = vmatpush1.msra.mxu0 %v797
        %1092 = vmatprep.subr.mxu0 %v806
        %1093 = vmatpush1.msra.mxu0 %v805
        %1094 = vmatprep.subr.mxu0 0.0
        %1095 = vmatpush1.msra.mxu0 0.0
        %1096 = vmatprep.subr.mxu0 0.0
        %1097 = vmatpush1.msra.mxu0 0.0
        %1098 = vmatprep.subr.mxu0 0.0
        %1099 = vmatpush1.msra.mxu0 0.0
        %1100 = vmatprep.subr.mxu0 0.0
        %1101 = vmatpush1.msra.mxu0 0.0
        %1102 = vmatprep.subr.mxu0 0.0
        %1103 = vmatpush1.msra.mxu0 0.0
        %1104 = vmatprep.subr.mxu0 0.0
        %1105 = vmatpush1.msra.mxu0 0.0
        %1106 = vmatprep.subr.mxu0 0.0
        %1107 = vmatpush1.msra.mxu0 0.0
        %1108 = vmatprep.subr.mxu0 0.0
        %1109 = vmatpush1.msra.mxu0 0.0
        %1110 = vmatprep.subr.mxu0 0.0
        %1111 = vmatpush1.msra.mxu0 0.0
        %1112 = vmatprep.subr.mxu0 0.0
        %1113 = vmatpush1.msra.mxu0 0.0
        %1114 = vmatprep.subr.mxu0 0.0
        %1115 = vmatpush1.msra.mxu0 0.0
        %1116 = vmatprep.subr.mxu0 0.0
        %1117 = vmatpush1.msra.mxu0 0.0
        %1118 = vmatprep.subr.mxu0 0.0
        %1119 = vmatpush1.msra.mxu0 0.0
        %1120 = vmatprep.subr.mxu0 0.0
        %1121 = vmatpush1.msra.mxu0 0.0
        %1122 = vmatprep.subr.mxu0 0.0
        %1123 = vmatpush1.msra.mxu0 0.0
        %1124 = vmatprep.subr.mxu0 0.0
        %1125 = vmatpush1.msra.mxu0 0.0
        %1126 = vmatprep.mubr.f32.mxu0 0.0
        %1127 = vmatmul.mubr.f32.gmra.mrb[0].mxu0 %v678
        %v1128 = vpop.f32.mrb[0].mxu0
        %v1129 = vadd.f32 %v836, %v1128
        %v1130 = vpop.f32.mrb[0].mxu0
        %v1131 = vadd.f32 %v840, %v1130
        %1132 = vdwg.mxu0
        %v1133 = vld [vmem:[#allocation2] sm:$0xff]
        %1134 = vmatprep.subr.mxu0 0.0
        %1135 = vmatpush1.xpose.msra.mxu0 %v916
        %1136 = vmatprep.subr.mxu0 0.0
        %1137 = vmatpush1.xpose.msra.mxu0 0.0
        %1138 = vmatprep.subr.mxu0 0.0
        %1139 = vmatpush1.xpose.msra.mxu0 0.0
        %1140 = vmatprep.subr.mxu0 0.0
        %1141 = vmatpush1.xpose.msra.mxu0 0.0
        %1142 = vmatprep.subr.mxu0 0.0
        %1143 = vmatpush1.xpose.msra.mxu0 0.0
        %1144 = vmatprep.subr.mxu0 0.0
        %1145 = vmatpush1.xpose.msra.mxu0 0.0
        %1146 = vmatprep.subr.mxu0 0.0
        %1147 = vmatpush1.xpose.msra.mxu0 0.0
        %1148 = vmatprep.subr.mxu0 0.0
        %1149 = vmatpush1.xpose.msra.mxu0 0.0
        %1150 = vmatprep.subr.mxu0 0.0
        %1151 = vmatpush1.xpose.msra.mxu0 0.0
        %1152 = vmatprep.subr.mxu0 0.0
        %1153 = vmatpush1.xpose.msra.mxu0 0.0
        %1154 = vmatprep.subr.mxu0 0.0
        %1155 = vmatpush1.xpose.msra.mxu0 0.0
        %1156 = vmatprep.subr.mxu0 0.0
        %1157 = vmatpush1.xpose.msra.mxu0 0.0
        %1158 = vmatprep.subr.mxu0 0.0
        %1159 = vmatpush1.xpose.msra.mxu0 0.0
        %1160 = vmatprep.subr.mxu0 0.0
        %1161 = vmatpush1.xpose.msra.mxu0 0.0
        %1162 = vmatprep.subr.mxu0 0.0
        %1163 = vmatpush1.xpose.msra.mxu0 0.0
        %1164 = vmatprep.subr.mxu0 0.0
        %1165 = vmatpush1.xpose.msra.mxu0 0.0
        %1166 = vmatprep.subr.mxu0 0.0
        %1167 = vmatpush1.xpose.msra.mxu0 0.0
        %1168 = vmatprep.subr.mxu0 0.0
        %1169 = vmatpush1.xpose.msra.mxu0 0.0
        %1170 = vmatprep.subr.mxu0 0.0
        %1171 = vmatpush1.xpose.msra.mxu0 0.0
        %1172 = vmatprep.subr.mxu0 0.0
        %1173 = vmatpush1.xpose.msra.mxu0 0.0
        %1174 = vmatprep.subr.mxu0 0.0
        %1175 = vmatpush1.xpose.msra.mxu0 0.0
        %1176 = vmatprep.subr.mxu0 0.0
        %1177 = vmatpush1.xpose.msra.mxu0 0.0
        %1178 = vmatprep.subr.mxu0 0.0
        %1179 = vmatpush1.xpose.msra.mxu0 0.0
        %1180 = vmatprep.subr.mxu0 0.0
        %1181 = vmatpush1.xpose.msra.mxu0 0.0
        %1182 = vmatprep.subr.mxu0 0.0
        %1183 = vmatpush1.xpose.msra.mxu0 0.0
        %1184 = vmatprep.subr.mxu0 0.0
        %1185 = vmatpush1.xpose.msra.mxu0 0.0
        %1186 = vmatprep.subr.mxu0 0.0
        %1187 = vmatpush1.xpose.msra.mxu0 0.0
        %1188 = vmatprep.subr.mxu0 0.0
        %1189 = vmatpush1.xpose.msra.mxu0 0.0
        %1190 = vmatprep.subr.mxu0 0.0
        %1191 = vmatpush1.xpose.msra.mxu0 0.0
        %1192 = vmatprep.subr.mxu0 0.0
        %1193 = vmatpush1.xpose.msra.mxu0 0.0
        %1194 = vmatprep.subr.mxu0 0.0
        %1195 = vmatpush1.xpose.msra.mxu0 0.0
        %1196 = vmatprep.subr.mxu0 0.0
        %1197 = vmatpush1.xpose.msra.mxu0 0.0
        %1198 = vmatprep.mubr.f32.mxu0 0.0
        %1199 = vmatmul.mubr.f32.gmra.mrb[0].mxu0 %v1133
        %v1200 = vpop.f32.mrb[0].mxu0
        %v1201 = vadd.f32 0.0, %v1200
        %v1202 = vpop.f32.mrb[0].mxu0
        %1203 = vdwg.mxu0
        %v1204 = vld [vmem:[#allocation3] sm:$0xff]
        %vm1205 = vcmask 64512
        %v1206 = vsel %vm1205, %v1201, -inf
        %1207 = vmax.xlane.f32.xlu0 %v1206
        %v1208 = vpop.xlane.xlu0 %1207
        %v1209 = vmax.f32 %v1204, %v1208
        %v1210 = vsub.f32 %v1204, %v1209
        %v1211 = vmul.f32 %v1210, 1.442695
        %v1212 = vpow.pop %v1211
        %1214 = vset.pattern.permute.xlu0 0
        %1215 = vperm.xlu0 %1214, %v1209
        %v1216 = vpop.permute.xlu0 %1215
        %v1218 = vsub.f32 %v1201, %v1216
        %v1219 = vmul.f32 %v1218, 1.442695
        %v1220 = vpow.pop %v1219
        %v1221 = vld [vmem:[#allocation4] sm:$0xff]
        %v1222 = vmul.f32 %v1212, %v1221
        %v1223 = vsel %vm1205, %v1220, 0.0
        %1224 = vadd.xlane.f32.xlu0 %v1223
        %v1225 = vpop.xlane.xlu0 %1224
        %v1226 = vadd.f32 %v1222, %v1225
        %vm1227 = vcmask 7168
        %1228 = vst.msk [vmem:[#allocation4] sm:$0xff] %vm1227, %v1226
        %v1230 = vsel %vm1205, %v1220, 0
        %1232 = vmatprep.subr.mxu0 0.0
        %1233 = vmatpush1.msra.mxu0 %v1058
        %1234 = vmatprep.subr.mxu0 0.0
        %1235 = vmatpush1.msra.mxu0 0.0
        %1236 = vmatprep.subr.mxu0 0.0
        %1237 = vmatpush1.msra.mxu0 0.0
        %1238 = vmatprep.subr.mxu0 0.0
        %1239 = vmatpush1.msra.mxu0 0.0
        %1240 = vmatprep.subr.mxu0 0.0
        %1241 = vmatpush1.msra.mxu0 0.0
        %1242 = vmatprep.subr.mxu0 0.0
        %1243 = vmatpush1.msra.mxu0 0.0
        %1244 = vmatprep.subr.mxu0 0.0
        %1245 = vmatpush1.msra.mxu0 0.0
        %1246 = vmatprep.subr.mxu0 0.0
        %1247 = vmatpush1.msra.mxu0 0.0
        %1248 = vmatprep.subr.mxu0 0.0
        %1249 = vmatpush1.msra.mxu0 0.0
        %1250 = vmatprep.subr.mxu0 0.0
        %1251 = vmatpush1.msra.mxu0 0.0
        %1252 = vmatprep.subr.mxu0 0.0
        %1253 = vmatpush1.msra.mxu0 0.0
        %1254 = vmatprep.subr.mxu0 0.0
        %1255 = vmatpush1.msra.mxu0 0.0
        %1256 = vmatprep.subr.mxu0 0.0
        %1257 = vmatpush1.msra.mxu0 0.0
        %1258 = vmatprep.subr.mxu0 0.0
        %1259 = vmatpush1.msra.mxu0 0.0
        %1260 = vmatprep.subr.mxu0 0.0
        %1261 = vmatpush1.msra.mxu0 0.0
        %1262 = vmatprep.subr.mxu0 0.0
        %1263 = vmatpush1.msra.mxu0 0.0
        %1264 = vmatprep.subr.mxu0 0.0
        %1265 = vmatpush1.msra.mxu0 0.0
        %1266 = vmatprep.subr.mxu0 0.0
        %1267 = vmatpush1.msra.mxu0 0.0
        %1268 = vmatprep.subr.mxu0 0.0
        %1269 = vmatpush1.msra.mxu0 0.0
        %1270 = vmatprep.subr.mxu0 0.0
        %1271 = vmatpush1.msra.mxu0 0.0
        %1272 = vmatprep.subr.mxu0 0.0
        %1273 = vmatpush1.msra.mxu0 0.0
        %1274 = vmatprep.subr.mxu0 0.0
        %1275 = vmatpush1.msra.mxu0 0.0
        %1276 = vmatprep.subr.mxu0 0.0
        %1277 = vmatpush1.msra.mxu0 0.0
        %1278 = vmatprep.subr.mxu0 0.0
        %1279 = vmatpush1.msra.mxu0 0.0
        %1280 = vmatprep.subr.mxu0 0.0
        %1281 = vmatpush1.msra.mxu0 0.0
        %1282 = vmatprep.subr.mxu0 0.0
        %1283 = vmatpush1.msra.mxu0 0.0
        %1284 = vmatprep.subr.mxu0 0.0
        %1285 = vmatpush1.msra.mxu0 0.0
        %1286 = vmatprep.subr.mxu0 0.0
        %1287 = vmatpush1.msra.mxu0 0.0
        %1288 = vmatprep.subr.mxu0 0.0
        %1289 = vmatpush1.msra.mxu0 0.0
        %1290 = vmatprep.subr.mxu0 0.0
        %1291 = vmatpush1.msra.mxu0 0.0
        %1292 = vmatprep.subr.mxu0 0.0
        %1293 = vmatpush1.msra.mxu0 0.0
        %1294 = vmatprep.subr.mxu0 0.0
        %1295 = vmatpush1.msra.mxu0 0.0
        %1296 = vmatprep.mubr.f32.mxu0 0.0
        %1297 = vmatmul.mubr.f32.gmra.mrb[0].mxu0 %v1230
        %v1298 = vpop.f32.mrb[0].mxu0
        %v1299 = vadd.f32 0.0, %v1298
        %v1300 = vpop.f32.mrb[0].mxu0
        %1301 = vdwg.mxu0
        %v1302 = vld [vmem:[#allocation5] sm:$0xff]
        %1304 = vset.pattern.permute.xlu0 0
        %1305 = vperm.xlu0 %1304, %v1212
        %v1306 = vpop.permute.xlu0 %1305
        %v1308 = vmul.f32 %v1306, %v1302
        %v1309 = vadd.f32 %v1308, %v1299
        %1310 = vst [vmem:[#allocation5] sm:$0xff] %v1309
        %1311 = vst.msk [vmem:[#allocation3] sm:$0xff] %vm1227, %v1209
        %v1312 = vld [vmem:[#allocation2 + $0x8] sm:$0xff]
        %1313 = vmatprep.subr.mxu0 0.0
        %1314 = vmatpush1.xpose.msra.mxu0 %v918
        %1315 = vmatprep.subr.mxu0 0.0
        %1316 = vmatpush1.xpose.msra.mxu0 0.0
        %1317 = vmatprep.subr.mxu0 0.0
        %1318 = vmatpush1.xpose.msra.mxu0 0.0
        %1319 = vmatprep.subr.mxu0 0.0
        %1320 = vmatpush1.xpose.msra.mxu0 0.0
        %1321 = vmatprep.subr.mxu0 0.0
        %1322 = vmatpush1.xpose.msra.mxu0 0.0
        %1323 = vmatprep.subr.mxu0 0.0
        %1324 = vmatpush1.xpose.msra.mxu0 0.0
        %1325 = vmatprep.subr.mxu0 0.0
        %1326 = vmatpush1.xpose.msra.mxu0 0.0
        %1327 = vmatprep.subr.mxu0 0.0
        %1328 = vmatpush1.xpose.msra.mxu0 0.0
        %1329 = vmatprep.subr.mxu0 0.0
        %1330 = vmatpush1.xpose.msra.mxu0 0.0
        %1331 = vmatprep.subr.mxu0 0.0
        %1332 = vmatpush1.xpose.msra.mxu0 0.0
        %1333 = vmatprep.subr.mxu0 0.0
        %1334 = vmatpush1.xpose.msra.mxu0 0.0
        %1335 = vmatprep.subr.mxu0 0.0
        %1336 = vmatpush1.xpose.msra.mxu0 0.0
        %1337 = vmatprep.subr.mxu0 0.0
        %1338 = vmatpush1.xpose.msra.mxu0 0.0
        %1339 = vmatprep.subr.mxu0 0.0
        %1340 = vmatpush1.xpose.msra.mxu0 0.0
        %1341 = vmatprep.subr.mxu0 0.0
        %1342 = vmatpush1.xpose.msra.mxu0 0.0
        %1343 = vmatprep.subr.mxu0 0.0
        %1344 = vmatpush1.xpose.msra.mxu0 0.0
        %1345 = vmatprep.subr.mxu0 0.0
        %1346 = vmatpush1.xpose.msra.mxu0 0.0
        %1347 = vmatprep.subr.mxu0 0.0
        %1348 = vmatpush1.xpose.msra.mxu0 0.0
        %1349 = vmatprep.subr.mxu0 0.0
        %1350 = vmatpush1.xpose.msra.mxu0 0.0
        %1351 = vmatprep.subr.mxu0 0.0
        %1352 = vmatpush1.xpose.msra.mxu0 0.0
        %1353 = vmatprep.subr.mxu0 0.0
        %1354 = vmatpush1.xpose.msra.mxu0 0.0
        %1355 = vmatprep.subr.mxu0 0.0
        %1356 = vmatpush1.xpose.msra.mxu0 0.0
        %1357 = vmatprep.subr.mxu0 0.0
        %1358 = vmatpush1.xpose.msra.mxu0 0.0
        %1359 = vmatprep.subr.mxu0 0.0
        %1360 = vmatpush1.xpose.msra.mxu0 0.0
        %1361 = vmatprep.subr.mxu0 0.0
        %1362 = vmatpush1.xpose.msra.mxu0 0.0
        %1363 = vmatprep.subr.mxu0 0.0
        %1364 = vmatpush1.xpose.msra.mxu0 0.0
        %1365 = vmatprep.subr.mxu0 0.0
        %1366 = vmatpush1.xpose.msra.mxu0 0.0
        %1367 = vmatprep.subr.mxu0 0.0
        %1368 = vmatpush1.xpose.msra.mxu0 0.0
        %1369 = vmatprep.subr.mxu0 0.0
        %1370 = vmatpush1.xpose.msra.mxu0 0.0
        %1371 = vmatprep.subr.mxu0 0.0
        %1372 = vmatpush1.xpose.msra.mxu0 0.0
        %1373 = vmatprep.subr.mxu0 0.0
        %1374 = vmatpush1.xpose.msra.mxu0 0.0
        %1375 = vmatprep.subr.mxu0 0.0
        %1376 = vmatpush1.xpose.msra.mxu0 0.0
        %1377 = vmatprep.mubr.f32.mxu0 0.0
        %1378 = vmatmul.mubr.f32.gmra.mrb[0].mxu0 %v1312
        %v1379 = vpop.f32.mrb[0].mxu0
        %v1380 = vadd.f32 0.0, %v1379
        %v1381 = vpop.f32.mrb[0].mxu0
        %1382 = vdwg.mxu0
        %s1383 = scalar_lea.vmem [#allocation3], 8
        %v1384 = vld [vmem:[%s1383] sm:$0xff]
        %v1385 = vsel %vm1205, %v1380, -inf
        %1386 = vmax.xlane.f32.xlu0 %v1385
        %v1387 = vpop.xlane.xlu0 %1386
        %v1388 = vmax.f32 %v1384, %v1387
        %v1389 = vsub.f32 %v1384, %v1388
        %v1390 = vmul.f32 %v1389, 1.442695
        %v1391 = vpow.pop %v1390
        %1393 = vset.pattern.permute.xlu0 0
        %1394 = vperm.xlu0 %1393, %v1388
        %v1395 = vpop.permute.xlu0 %1394
        %v1397 = vsub.f32 %v1380, %v1395
        %v1398 = vmul.f32 %v1397, 1.442695
        %v1399 = vpow.pop %v1398
        %s1400 = scalar_lea.vmem [#allocation4], 8
        %v1401 = vld [vmem:[%s1400] sm:$0xff]
        %v1402 = vmul.f32 %v1391, %v1401
        %v1403 = vsel %vm1205, %v1399, 0.0
        %1404 = vadd.xlane.f32.xlu0 %v1403
        %v1405 = vpop.xlane.xlu0 %1404
        %v1406 = vadd.f32 %v1402, %v1405
        %1407 = vst.msk [vmem:[%s1400] sm:$0xff] %vm1227, %v1406
        %v1409 = vsel %vm1205, %v1399, 0
        %1411 = vmatprep.subr.mxu0 0.0
        %1412 = vmatpush1.msra.mxu0 %v1060
        %1413 = vmatprep.subr.mxu0 0.0
        %1414 = vmatpush1.msra.mxu0 0.0
        %1415 = vmatprep.subr.mxu0 0.0
        %1416 = vmatpush1.msra.mxu0 0.0
        %1417 = vmatprep.subr.mxu0 0.0
        %1418 = vmatpush1.msra.mxu0 0.0
        %1419 = vmatprep.subr.mxu0 0.0
        %1420 = vmatpush1.msra.mxu0 0.0
        %1421 = vmatprep.subr.mxu0 0.0
        %1422 = vmatpush1.msra.mxu0 0.0
        %1423 = vmatprep.subr.mxu0 0.0
        %1424 = vmatpush1.msra.mxu0 0.0
        %1425 = vmatprep.subr.mxu0 0.0
        %1426 = vmatpush1.msra.mxu0 0.0
        %1427 = vmatprep.subr.mxu0 0.0
        %1428 = vmatpush1.msra.mxu0 0.0
        %1429 = vmatprep.subr.mxu0 0.0
        %1430 = vmatpush1.msra.mxu0 0.0
        %1431 = vmatprep.subr.mxu0 0.0
        %1432 = vmatpush1.msra.mxu0 0.0
        %1433 = vmatprep.subr.mxu0 0.0
        %1434 = vmatpush1.msra.mxu0 0.0
        %1435 = vmatprep.subr.mxu0 0.0
        %1436 = vmatpush1.msra.mxu0 0.0
        %1437 = vmatprep.subr.mxu0 0.0
        %1438 = vmatpush1.msra.mxu0 0.0
        %1439 = vmatprep.subr.mxu0 0.0
        %1440 = vmatpush1.msra.mxu0 0.0
        %1441 = vmatprep.subr.mxu0 0.0
        %1442 = vmatpush1.msra.mxu0 0.0
        %1443 = vmatprep.subr.mxu0 0.0
        %1444 = vmatpush1.msra.mxu0 0.0
        %1445 = vmatprep.subr.mxu0 0.0
        %1446 = vmatpush1.msra.mxu0 0.0
        %1447 = vmatprep.subr.mxu0 0.0
        %1448 = vmatpush1.msra.mxu0 0.0
        %1449 = vmatprep.subr.mxu0 0.0
        %1450 = vmatpush1.msra.mxu0 0.0
        %1451 = vmatprep.subr.mxu0 0.0
        %1452 = vmatpush1.msra.mxu0 0.0
        %1453 = vmatprep.subr.mxu0 0.0
        %1454 = vmatpush1.msra.mxu0 0.0
        %1455 = vmatprep.subr.mxu0 0.0
        %1456 = vmatpush1.msra.mxu0 0.0
        %1457 = vmatprep.subr.mxu0 0.0
        %1458 = vmatpush1.msra.mxu0 0.0
        %1459 = vmatprep.subr.mxu0 0.0
        %1460 = vmatpush1.msra.mxu0 0.0
        %1461 = vmatprep.subr.mxu0 0.0
        %1462 = vmatpush1.msra.mxu0 0.0
        %1463 = vmatprep.subr.mxu0 0.0
        %1464 = vmatpush1.msra.mxu0 0.0
        %1465 = vmatprep.subr.mxu0 0.0
        %1466 = vmatpush1.msra.mxu0 0.0
        %1467 = vmatprep.subr.mxu0 0.0
        %1468 = vmatpush1.msra.mxu0 0.0
        %1469 = vmatprep.subr.mxu0 0.0
        %1470 = vmatpush1.msra.mxu0 0.0
        %1471 = vmatprep.subr.mxu0 0.0
        %1472 = vmatpush1.msra.mxu0 0.0
        %1473 = vmatprep.subr.mxu0 0.0
        %1474 = vmatpush1.msra.mxu0 0.0
        %1475 = vmatprep.mubr.f32.mxu0 0.0
        %1476 = vmatmul.mubr.f32.gmra.mrb[0].mxu0 %v1409
        %v1477 = vpop.f32.mrb[0].mxu0
        %v1478 = vadd.f32 0.0, %v1477
        %v1479 = vpop.f32.mrb[0].mxu0
        %1480 = vdwg.mxu0
        %v1481 = vld [vmem:[#allocation5 + $0x8] sm:$0xff]
        %1483 = vset.pattern.permute.xlu0 0
        %1484 = vperm.xlu0 %1483, %v1391
        %v1485 = vpop.permute.xlu0 %1484
        %v1487 = vmul.f32 %v1485, %v1481
        %v1488 = vadd.f32 %v1487, %v1478
        %1489 = vst [vmem:[#allocation5 + $0x8] sm:$0xff] %v1488
        %1490 = vst.msk [vmem:[%s1383] sm:$0xff] %vm1227, %v1388
        %v1491 = vld [vmem:[#allocation2 + $0x10] sm:$0xff]
        %1492 = vmatprep.subr.mxu0 0.0
        %1493 = vmatpush1.xpose.msra.mxu0 %v987
        %1494 = vmatprep.subr.mxu0 0.0
        %1495 = vmatpush1.xpose.msra.mxu0 0.0
        %1496 = vmatprep.subr.mxu0 0.0
        %1497 = vmatpush1.xpose.msra.mxu0 0.0
        %1498 = vmatprep.subr.mxu0 0.0
        %1499 = vmatpush1.xpose.msra.mxu0 0.0
        %1500 = vmatprep.subr.mxu0 0.0
        %1501 = vmatpush1.xpose.msra.mxu0 0.0
        %1502 = vmatprep.subr.mxu0 0.0
        %1503 = vmatpush1.xpose.msra.mxu0 0.0
        %1504 = vmatprep.subr.mxu0 0.0
        %1505 = vmatpush1.xpose.msra.mxu0 0.0
        %1506 = vmatprep.subr.mxu0 0.0
        %1507 = vmatpush1.xpose.msra.mxu0 0.0
        %1508 = vmatprep.subr.mxu0 0.0
        %1509 = vmatpush1.xpose.msra.mxu0 0.0
        %1510 = vmatprep.subr.mxu0 0.0
        %1511 = vmatpush1.xpose.msra.mxu0 0.0
        %1512 = vmatprep.subr.mxu0 0.0
        %1513 = vmatpush1.xpose.msra.mxu0 0.0
        %1514 = vmatprep.subr.mxu0 0.0
        %1515 = vmatpush1.xpose.msra.mxu0 0.0
        %1516 = vmatprep.subr.mxu0 0.0
        %1517 = vmatpush1.xpose.msra.mxu0 0.0
        %1518 = vmatprep.subr.mxu0 0.0
        %1519 = vmatpush1.xpose.msra.mxu0 0.0
        %1520 = vmatprep.subr.mxu0 0.0
        %1521 = vmatpush1.xpose.msra.mxu0 0.0
        %1522 = vmatprep.subr.mxu0 0.0
        %1523 = vmatpush1.xpose.msra.mxu0 0.0
        %1524 = vmatprep.subr.mxu0 0.0
        %1525 = vmatpush1.xpose.msra.mxu0 0.0
        %1526 = vmatprep.subr.mxu0 0.0
        %1527 = vmatpush1.xpose.msra.mxu0 0.0
        %1528 = vmatprep.subr.mxu0 0.0
        %1529 = vmatpush1.xpose.msra.mxu0 0.0
        %1530 = vmatprep.subr.mxu0 0.0
        %1531 = vmatpush1.xpose.msra.mxu0 0.0
        %1532 = vmatprep.subr.mxu0 0.0
        %1533 = vmatpush1.xpose.msra.mxu0 0.0
        %1534 = vmatprep.subr.mxu0 0.0
        %1535 = vmatpush1.xpose.msra.mxu0 0.0
        %1536 = vmatprep.subr.mxu0 0.0
        %1537 = vmatpush1.xpose.msra.mxu0 0.0
        %1538 = vmatprep.subr.mxu0 0.0
        %1539 = vmatpush1.xpose.msra.mxu0 0.0
        %1540 = vmatprep.subr.mxu0 0.0
        %1541 = vmatpush1.xpose.msra.mxu0 0.0
        %1542 = vmatprep.subr.mxu0 0.0
        %1543 = vmatpush1.xpose.msra.mxu0 0.0
        %1544 = vmatprep.subr.mxu0 0.0
        %1545 = vmatpush1.xpose.msra.mxu0 0.0
        %1546 = vmatprep.subr.mxu0 0.0
        %1547 = vmatpush1.xpose.msra.mxu0 0.0
        %1548 = vmatprep.subr.mxu0 0.0
        %1549 = vmatpush1.xpose.msra.mxu0 0.0
        %1550 = vmatprep.subr.mxu0 0.0
        %1551 = vmatpush1.xpose.msra.mxu0 0.0
        %1552 = vmatprep.subr.mxu0 0.0
        %1553 = vmatpush1.xpose.msra.mxu0 0.0
        %1554 = vmatprep.subr.mxu0 0.0
        %1555 = vmatpush1.xpose.msra.mxu0 0.0
        %1556 = vmatprep.mubr.f32.mxu0 0.0
        %1557 = vmatmul.mubr.f32.gmra.mrb[0].mxu0 %v1491
        %v1558 = vpop.f32.mrb[0].mxu0
        %v1559 = vadd.f32 0.0, %v1558
        %v1560 = vpop.f32.mrb[0].mxu0
        %1561 = vdwg.mxu0
        %s1562 = scalar_lea.vmem [#allocation3], 16
        %v1563 = vld [vmem:[%s1562] sm:$0xff]
        %v1564 = vsel %vm1205, %v1559, -inf
        %1565 = vmax.xlane.f32.xlu0 %v1564
        %v1566 = vpop.xlane.xlu0 %1565
        %v1567 = vmax.f32 %v1563, %v1566
        %v1568 = vsub.f32 %v1563, %v1567
        %v1569 = vmul.f32 %v1568, 1.442695
        %v1570 = vpow.pop %v1569
        %1572 = vset.pattern.permute.xlu0 0
        %1573 = vperm.xlu0 %1572, %v1567
        %v1574 = vpop.permute.xlu0 %1573
        %v1576 = vsub.f32 %v1559, %v1574
        %v1577 = vmul.f32 %v1576, 1.442695
        %v1578 = vpow.pop %v1577
        %s1579 = scalar_lea.vmem [#allocation4], 16
        %v1580 = vld [vmem:[%s1579] sm:$0xff]
        %v1581 = vmul.f32 %v1570, %v1580
        %v1582 = vsel %vm1205, %v1578, 0.0
        %1583 = vadd.xlane.f32.xlu0 %v1582
        %v1584 = vpop.xlane.xlu0 %1583
        %v1585 = vadd.f32 %v1581, %v1584
        %1586 = vst.msk [vmem:[%s1579] sm:$0xff] %vm1227, %v1585
        %v1588 = vsel %vm1205, %v1578, 0
        %1590 = vmatprep.subr.mxu0 0.0
        %1591 = vmatpush1.msra.mxu0 %v1129
        %1592 = vmatprep.subr.mxu0 0.0
        %1593 = vmatpush1.msra.mxu0 0.0
        %1594 = vmatprep.subr.mxu0 0.0
        %1595 = vmatpush1.msra.mxu0 0.0
        %1596 = vmatprep.subr.mxu0 0.0
        %1597 = vmatpush1.msra.mxu0 0.0
        %1598 = vmatprep.subr.mxu0 0.0
        %1599 = vmatpush1.msra.mxu0 0.0
        %1600 = vmatprep.subr.mxu0 0.0
        %1601 = vmatpush1.msra.mxu0 0.0
        %1602 = vmatprep.subr.mxu0 0.0
        %1603 = vmatpush1.msra.mxu0 0.0
        %1604 = vmatprep.subr.mxu0 0.0
        %1605 = vmatpush1.msra.mxu0 0.0
        %1606 = vmatprep.subr.mxu0 0.0
        %1607 = vmatpush1.msra.mxu0 0.0
        %1608 = vmatprep.subr.mxu0 0.0
        %1609 = vmatpush1.msra.mxu0 0.0
        %1610 = vmatprep.subr.mxu0 0.0
        %1611 = vmatpush1.msra.mxu0 0.0
        %1612 = vmatprep.subr.mxu0 0.0
        %1613 = vmatpush1.msra.mxu0 0.0
        %1614 = vmatprep.subr.mxu0 0.0
        %1615 = vmatpush1.msra.mxu0 0.0
        %1616 = vmatprep.subr.mxu0 0.0
        %1617 = vmatpush1.msra.mxu0 0.0
        %1618 = vmatprep.subr.mxu0 0.0
        %1619 = vmatpush1.msra.mxu0 0.0
        %1620 = vmatprep.subr.mxu0 0.0
        %1621 = vmatpush1.msra.mxu0 0.0
        %1622 = vmatprep.subr.mxu0 0.0
        %1623 = vmatpush1.msra.mxu0 0.0
        %1624 = vmatprep.subr.mxu0 0.0
        %1625 = vmatpush1.msra.mxu0 0.0
        %1626 = vmatprep.subr.mxu0 0.0
        %1627 = vmatpush1.msra.mxu0 0.0
        %1628 = vmatprep.subr.mxu0 0.0
        %1629 = vmatpush1.msra.mxu0 0.0
        %1630 = vmatprep.subr.mxu0 0.0
        %1631 = vmatpush1.msra.mxu0 0.0
        %1632 = vmatprep.subr.mxu0 0.0
        %1633 = vmatpush1.msra.mxu0 0.0
        %1634 = vmatprep.subr.mxu0 0.0
        %1635 = vmatpush1.msra.mxu0 0.0
        %1636 = vmatprep.subr.mxu0 0.0
        %1637 = vmatpush1.msra.mxu0 0.0
        %1638 = vmatprep.subr.mxu0 0.0
        %1639 = vmatpush1.msra.mxu0 0.0
        %1640 = vmatprep.subr.mxu0 0.0
        %1641 = vmatpush1.msra.mxu0 0.0
        %1642 = vmatprep.subr.mxu0 0.0
        %1643 = vmatpush1.msra.mxu0 0.0
        %1644 = vmatprep.subr.mxu0 0.0
        %1645 = vmatpush1.msra.mxu0 0.0
        %1646 = vmatprep.subr.mxu0 0.0
        %1647 = vmatpush1.msra.mxu0 0.0
        %1648 = vmatprep.subr.mxu0 0.0
        %1649 = vmatpush1.msra.mxu0 0.0
        %1650 = vmatprep.subr.mxu0 0.0
        %1651 = vmatpush1.msra.mxu0 0.0
        %1652 = vmatprep.subr.mxu0 0.0
        %1653 = vmatpush1.msra.mxu0 0.0
        %1654 = vmatprep.mubr.f32.mxu0 0.0
        %1655 = vmatmul.mubr.f32.gmra.mrb[0].mxu0 %v1588
        %v1656 = vpop.f32.mrb[0].mxu0
        %v1657 = vadd.f32 0.0, %v1656
        %v1658 = vpop.f32.mrb[0].mxu0
        %1659 = vdwg.mxu0
        %v1660 = vld [vmem:[#allocation5 + $0x10] sm:$0xff]
        %1662 = vset.pattern.permute.xlu0 0
        %1663 = vperm.xlu0 %1662, %v1570
        %v1664 = vpop.permute.xlu0 %1663
        %v1666 = vmul.f32 %v1664, %v1660
        %v1667 = vadd.f32 %v1666, %v1657
        %1668 = vst [vmem:[#allocation5 + $0x10] sm:$0xff] %v1667
        %1669 = vst.msk [vmem:[%s1562] sm:$0xff] %vm1227, %v1567
        %v1670 = vld [vmem:[#allocation2 + $0x18] sm:$0xff]
        %1671 = vmatprep.subr.mxu0 0.0
        %1672 = vmatpush1.xpose.msra.mxu0 %v989
        %1673 = vmatprep.subr.mxu0 0.0
        %1674 = vmatpush1.xpose.msra.mxu0 0.0
        %1675 = vmatprep.subr.mxu0 0.0
        %1676 = vmatpush1.xpose.msra.mxu0 0.0
        %1677 = vmatprep.subr.mxu0 0.0
        %1678 = vmatpush1.xpose.msra.mxu0 0.0
        %1679 = vmatprep.subr.mxu0 0.0
        %1680 = vmatpush1.xpose.msra.mxu0 0.0
        %1681 = vmatprep.subr.mxu0 0.0
        %1682 = vmatpush1.xpose.msra.mxu0 0.0
        %1683 = vmatprep.subr.mxu0 0.0
        %1684 = vmatpush1.xpose.msra.mxu0 0.0
        %1685 = vmatprep.subr.mxu0 0.0
        %1686 = vmatpush1.xpose.msra.mxu0 0.0
        %1687 = vmatprep.subr.mxu0 0.0
        %1688 = vmatpush1.xpose.msra.mxu0 0.0
        %1689 = vmatprep.subr.mxu0 0.0
        %1690 = vmatpush1.xpose.msra.mxu0 0.0
        %1691 = vmatprep.subr.mxu0 0.0
        %1692 = vmatpush1.xpose.msra.mxu0 0.0
        %1693 = vmatprep.subr.mxu0 0.0
        %1694 = vmatpush1.xpose.msra.mxu0 0.0
        %1695 = vmatprep.subr.mxu0 0.0
        %1696 = vmatpush1.xpose.msra.mxu0 0.0
        %1697 = vmatprep.subr.mxu0 0.0
        %1698 = vmatpush1.xpose.msra.mxu0 0.0
        %1699 = vmatprep.subr.mxu0 0.0
        %1700 = vmatpush1.xpose.msra.mxu0 0.0
        %1701 = vmatprep.subr.mxu0 0.0
        %1702 = vmatpush1.xpose.msra.mxu0 0.0
        %1703 = vmatprep.subr.mxu0 0.0
        %1704 = vmatpush1.xpose.msra.mxu0 0.0
        %1705 = vmatprep.subr.mxu0 0.0
        %1706 = vmatpush1.xpose.msra.mxu0 0.0
        %1707 = vmatprep.subr.mxu0 0.0
        %1708 = vmatpush1.xpose.msra.mxu0 0.0
        %1709 = vmatprep.subr.mxu0 0.0
        %1710 = vmatpush1.xpose.msra.mxu0 0.0
        %1711 = vmatprep.subr.mxu0 0.0
        %1712 = vmatpush1.xpose.msra.mxu0 0.0
        %1713 = vmatprep.subr.mxu0 0.0
        %1714 = vmatpush1.xpose.msra.mxu0 0.0
        %1715 = vmatprep.subr.mxu0 0.0
        %1716 = vmatpush1.xpose.msra.mxu0 0.0
        %1717 = vmatprep.subr.mxu0 0.0
        %1718 = vmatpush1.xpose.msra.mxu0 0.0
        %1719 = vmatprep.subr.mxu0 0.0
        %1720 = vmatpush1.xpose.msra.mxu0 0.0
        %1721 = vmatprep.subr.mxu0 0.0
        %1722 = vmatpush1.xpose.msra.mxu0 0.0
        %1723 = vmatprep.subr.mxu0 0.0
        %1724 = vmatpush1.xpose.msra.mxu0 0.0
        %1725 = vmatprep.subr.mxu0 0.0
        %1726 = vmatpush1.xpose.msra.mxu0 0.0
        %1727 = vmatprep.subr.mxu0 0.0
        %1728 = vmatpush1.xpose.msra.mxu0 0.0
        %1729 = vmatprep.subr.mxu0 0.0
        %1730 = vmatpush1.xpose.msra.mxu0 0.0
        %1731 = vmatprep.subr.mxu0 0.0
        %1732 = vmatpush1.xpose.msra.mxu0 0.0
        %1733 = vmatprep.subr.mxu0 0.0
        %1734 = vmatpush1.xpose.msra.mxu0 0.0
        %1735 = vmatprep.mubr.f32.mxu0 0.0
        %1736 = vmatmul.mubr.f32.gmra.mrb[0].mxu0 %v1670
        %v1737 = vpop.f32.mrb[0].mxu0
        %v1738 = vadd.f32 0.0, %v1737
        %v1739 = vpop.f32.mrb[0].mxu0
        %1740 = vdwg.mxu0
        %s1741 = scalar_lea.vmem [#allocation3], 24
        %v1742 = vld [vmem:[%s1741] sm:$0xff]
        %v1743 = vsel %vm1205, %v1738, -inf
        %1744 = vmax.xlane.f32.xlu0 %v1743
        %v1745 = vpop.xlane.xlu0 %1744
        %v1746 = vmax.f32 %v1742, %v1745
        %v1747 = vsub.f32 %v1742, %v1746
        %v1748 = vmul.f32 %v1747, 1.442695
        %v1749 = vpow.pop %v1748
        %1751 = vset.pattern.permute.xlu0 0
        %1752 = vperm.xlu0 %1751, %v1746
        %v1753 = vpop.permute.xlu0 %1752
        %v1755 = vsub.f32 %v1738, %v1753
        %v1756 = vmul.f32 %v1755, 1.442695
        %v1757 = vpow.pop %v1756
        %s1758 = scalar_lea.vmem [#allocation4], 24
        %v1759 = vld [vmem:[%s1758] sm:$0xff]
        %v1760 = vmul.f32 %v1749, %v1759
        %v1761 = vsel %vm1205, %v1757, 0.0
        %1762 = vadd.xlane.f32.xlu0 %v1761
        %v1763 = vpop.xlane.xlu0 %1762
        %v1764 = vadd.f32 %v1760, %v1763
        %1765 = vst.msk [vmem:[%s1758] sm:$0xff] %vm1227, %v1764
        %v1767 = vsel %vm1205, %v1757, 0
        %1769 = vmatprep.subr.mxu0 0.0
        %1770 = vmatpush1.msra.mxu0 %v1131
        %1771 = vmatprep.subr.mxu0 0.0
        %1772 = vmatpush1.msra.mxu0 0.0
        %1773 = vmatprep.subr.mxu0 0.0
        %1774 = vmatpush1.msra.mxu0 0.0
        %1775 = vmatprep.subr.mxu0 0.0
        %1776 = vmatpush1.msra.mxu0 0.0
        %1777 = vmatprep.subr.mxu0 0.0
        %1778 = vmatpush1.msra.mxu0 0.0
        %1779 = vmatprep.subr.mxu0 0.0
        %1780 = vmatpush1.msra.mxu0 0.0
        %1781 = vmatprep.subr.mxu0 0.0
        %1782 = vmatpush1.msra.mxu0 0.0
        %1783 = vmatprep.subr.mxu0 0.0
        %1784 = vmatpush1.msra.mxu0 0.0
        %1785 = vmatprep.subr.mxu0 0.0
        %1786 = vmatpush1.msra.mxu0 0.0
        %1787 = vmatprep.subr.mxu0 0.0
        %1788 = vmatpush1.msra.mxu0 0.0
        %1789 = vmatprep.subr.mxu0 0.0
        %1790 = vmatpush1.msra.mxu0 0.0
        %1791 = vmatprep.subr.mxu0 0.0
        %1792 = vmatpush1.msra.mxu0 0.0
        %1793 = vmatprep.subr.mxu0 0.0
        %1794 = vmatpush1.msra.mxu0 0.0
        %1795 = vmatprep.subr.mxu0 0.0
        %1796 = vmatpush1.msra.mxu0 0.0
        %1797 = vmatprep.subr.mxu0 0.0
        %1798 = vmatpush1.msra.mxu0 0.0
        %1799 = vmatprep.subr.mxu0 0.0
        %1800 = vmatpush1.msra.mxu0 0.0
        %1801 = vmatprep.subr.mxu0 0.0
        %1802 = vmatpush1.msra.mxu0 0.0
        %1803 = vmatprep.subr.mxu0 0.0
        %1804 = vmatpush1.msra.mxu0 0.0
        %1805 = vmatprep.subr.mxu0 0.0
        %1806 = vmatpush1.msra.mxu0 0.0
        %1807 = vmatprep.subr.mxu0 0.0
        %1808 = vmatpush1.msra.mxu0 0.0
        %1809 = vmatprep.subr.mxu0 0.0
        %1810 = vmatpush1.msra.mxu0 0.0
        %1811 = vmatprep.subr.mxu0 0.0
        %1812 = vmatpush1.msra.mxu0 0.0
        %1813 = vmatprep.subr.mxu0 0.0
        %1814 = vmatpush1.msra.mxu0 0.0
        %1815 = vmatprep.subr.mxu0 0.0
        %1816 = vmatpush1.msra.mxu0 0.0
        %1817 = vmatprep.subr.mxu0 0.0
        %1818 = vmatpush1.msra.mxu0 0.0
        %1819 = vmatprep.subr.mxu0 0.0
        %1820 = vmatpush1.msra.mxu0 0.0
        %1821 = vmatprep.subr.mxu0 0.0
        %1822 = vmatpush1.msra.mxu0 0.0
        %1823 = vmatprep.subr.mxu0 0.0
        %1824 = vmatpush1.msra.mxu0 0.0
        %1825 = vmatprep.subr.mxu0 0.0
        %1826 = vmatpush1.msra.mxu0 0.0
        %1827 = vmatprep.subr.mxu0 0.0
        %1828 = vmatpush1.msra.mxu0 0.0
        %1829 = vmatprep.subr.mxu0 0.0
        %1830 = vmatpush1.msra.mxu0 0.0
        %1831 = vmatprep.subr.mxu0 0.0
        %1832 = vmatpush1.msra.mxu0 0.0
        %1833 = vmatprep.mubr.f32.mxu0 0.0
        %1834 = vmatmul.mubr.f32.gmra.mrb[0].mxu0 %v1767
        %v1835 = vpop.f32.mrb[0].mxu0
        %v1836 = vadd.f32 0.0, %v1835
        %v1837 = vpop.f32.mrb[0].mxu0
        %1838 = vdwg.mxu0
        %v1839 = vld [vmem:[#allocation5 + $0x18] sm:$0xff]
        %1841 = vset.pattern.permute.xlu0 0
        %1842 = vperm.xlu0 %1841, %v1749
        %v1843 = vpop.permute.xlu0 %1842
        %v1845 = vmul.f32 %v1843, %v1839
        %v1846 = vadd.f32 %v1845, %v1836
        %1847 = vst [vmem:[#allocation5 + $0x18] sm:$0xff] %v1846
        %1848 = vst.msk [vmem:[%s1741] sm:$0xff] %vm1227, %v1746
        // Predicated region
        $region77: #{tpu_custom_call.1} parent=51 // pred_check
          %p1849 = pneg %p428
        $region78: #{tpu_custom_call.1} parent=51 // pred_check_branch
          %1851 = sbr.rel (%p1849) target = $region80
        $region79: #{tpu_custom_call.1} parent=51 // pred_region
          %v1852 = vld [vmem:[#allocation4] sm:$0xff]
          %v1853 = vrcp.pop %v1852
          %v1854 = vld [vmem:[#allocation5] sm:$0xff]
          %1856 = vset.pattern.permute.xlu0 0
          %1857 = vperm.xlu0 %1856, %v1853
          %v1858 = vpop.permute.xlu0 %1857
          %v1860 = vmul.f32 %v1854, %v1858
          %1861 = vst [vmem:[#allocation5] sm:$0xff] %v1860
          %v1862 = vld [vmem:[%s1400] sm:$0xff]
          %v1863 = vrcp.pop %v1862
          %v1864 = vld [vmem:[#allocation5 + $0x8] sm:$0xff]
          %1866 = vset.pattern.permute.xlu0 0
          %1867 = vperm.xlu0 %1866, %v1863
          %v1868 = vpop.permute.xlu0 %1867
          %v1870 = vmul.f32 %v1864, %v1868
          %1871 = vst [vmem:[#allocation5 + $0x8] sm:$0xff] %v1870
          %v1872 = vld [vmem:[%s1579] sm:$0xff]
          %v1873 = vrcp.pop %v1872
          %v1874 = vld [vmem:[#allocation5 + $0x10] sm:$0xff]
          %1876 = vset.pattern.permute.xlu0 0
          %1877 = vperm.xlu0 %1876, %v1873
          %v1878 = vpop.permute.xlu0 %1877
          %v1880 = vmul.f32 %v1874, %v1878
          %1881 = vst [vmem:[#allocation5 + $0x10] sm:$0xff] %v1880
          %v1882 = vld [vmem:[%s1758] sm:$0xff]
          %v1883 = vrcp.pop %v1882
          %v1884 = vld [vmem:[#allocation5 + $0x18] sm:$0xff]
          %1886 = vset.pattern.permute.xlu0 0
          %1887 = vperm.xlu0 %1886, %v1883
          %v1888 = vpop.permute.xlu0 %1887
          %v1890 = vmul.f32 %v1884, %v1888
          %1891 = vst [vmem:[#allocation5 + $0x18] sm:$0xff] %v1890
          %v1892 = vld [vmem:[#allocation5] sm:$0xff]
          %v1893 = vld [vmem:[#allocation5 + $0x8] sm:$0xff]
          %v1894 = vld [vmem:[#allocation5 + $0x10] sm:$0xff]
          %v1895 = vld [vmem:[#allocation5 + $0x18] sm:$0xff]
          %v1896 = vld [vmem:[#allocation14] sm:$0xff]
          %v1897 = vld [vmem:[#allocation14 + $0x8] sm:$0xff]
          %v1898 = vld [vmem:[#allocation14 + $0x10] sm:$0xff]
          %v1899 = vld [vmem:[#allocation14 + $0x18] sm:$0xff]
          %v1900 = vld [vmem:[#allocation14 + $0x20] sm:$0xff]
          %v1901 = vld [vmem:[#allocation14 + $0x28] sm:$0xff]
          %v1902 = vld [vmem:[#allocation14 + $0x30] sm:$0xff]
          %v1903 = vld [vmem:[#allocation14 + $0x38] sm:$0xff]
          %v1904 = vld [vmem:[#allocation14 + $0x40] sm:$0xff]
          %v1905 = vld [vmem:[#allocation14 + $0x48] sm:$0xff]
          %v1906 = vld [vmem:[#allocation14 + $0x50] sm:$0xff]
          %v1907 = vld [vmem:[#allocation14 + $0x58] sm:$0xff]
          %v1908 = vld [vmem:[#allocation14 + $0x60] sm:$0xff]
          %v1909 = vld [vmem:[#allocation14 + $0x68] sm:$0xff]
          %v1910 = vld [vmem:[#allocation14 + $0x70] sm:$0xff]
          %v1911 = vld [vmem:[#allocation14 + $0x78] sm:$0xff]
          %v1912 = vld [vmem:[#allocation14 + $0x80] sm:$0xff]
          %v1913 = vld [vmem:[#allocation14 + $0x88] sm:$0xff]
          %v1914 = vld [vmem:[#allocation14 + $0x90] sm:$0xff]
          %v1915 = vld [vmem:[#allocation14 + $0x98] sm:$0xff]
          %v1916 = vld [vmem:[#allocation14 + $0xa0] sm:$0xff]
          %v1917 = vld [vmem:[#allocation14 + $0xa8] sm:$0xff]
          %v1918 = vld [vmem:[#allocation14 + $0xb0] sm:$0xff]
          %v1919 = vld [vmem:[#allocation14 + $0xb8] sm:$0xff]
          %v1920 = vld [vmem:[#allocation14 + $0xc0] sm:$0xff]
          %v1921 = vld [vmem:[#allocation14 + $0xc8] sm:$0xff]
          %v1922 = vld [vmem:[#allocation14 + $0xd0] sm:$0xff]
          %v1923 = vld [vmem:[#allocation14 + $0xd8] sm:$0xff]
          %v1924 = vld [vmem:[#allocation14 + $0xe0] sm:$0xff]
          %v1925 = vld [vmem:[#allocation14 + $0xe8] sm:$0xff]
          %v1926 = vld [vmem:[#allocation14 + $0xf0] sm:$0xff]
          %v1927 = vld [vmem:[#allocation14 + $0xf8] sm:$0xff]
          %v1928 = vld [vmem:[#allocation14 + $0x100] sm:$0xff]
          %v1929 = vld [vmem:[#allocation14 + $0x108] sm:$0xff]
          %v1930 = vld [vmem:[#allocation14 + $0x110] sm:$0xff]
          %v1931 = vld [vmem:[#allocation14 + $0x118] sm:$0xff]
          %v1932 = vld [vmem:[#allocation14 + $0x120] sm:$0xff]
          %v1933 = vld [vmem:[#allocation14 + $0x128] sm:$0xff]
          %v1934 = vld [vmem:[#allocation14 + $0x130] sm:$0xff]
          %v1935 = vld [vmem:[#allocation14 + $0x138] sm:$0xff]
          %v1936 = vld [vmem:[#allocation14 + $0x140] sm:$0xff]
          %v1937 = vld [vmem:[#allocation14 + $0x148] sm:$0xff]
          %v1938 = vld [vmem:[#allocation14 + $0x150] sm:$0xff]
          %v1939 = vld [vmem:[#allocation14 + $0x158] sm:$0xff]
          %v1940 = vld [vmem:[#allocation14 + $0x160] sm:$0xff]
          %v1941 = vld [vmem:[#allocation14 + $0x168] sm:$0xff]
          %v1942 = vld [vmem:[#allocation14 + $0x170] sm:$0xff]
          %v1943 = vld [vmem:[#allocation14 + $0x178] sm:$0xff]
          %v1944 = vld [vmem:[#allocation14 + $0x180] sm:$0xff]
          %v1945 = vld [vmem:[#allocation14 + $0x188] sm:$0xff]
          %v1946 = vld [vmem:[#allocation14 + $0x190] sm:$0xff]
          %v1947 = vld [vmem:[#allocation14 + $0x198] sm:$0xff]
          %v1948 = vld [vmem:[#allocation14 + $0x1a0] sm:$0xff]
          %v1949 = vld [vmem:[#allocation14 + $0x1a8] sm:$0xff]
          %v1950 = vld [vmem:[#allocation14 + $0x1b0] sm:$0xff]
          %v1951 = vld [vmem:[#allocation14 + $0x1b8] sm:$0xff]
          %v1952 = vld [vmem:[#allocation14 + $0x1c0] sm:$0xff]
          %v1953 = vld [vmem:[#allocation14 + $0x1c8] sm:$0xff]
          %v1954 = vld [vmem:[#allocation14 + $0x1d0] sm:$0xff]
          %v1955 = vld [vmem:[#allocation14 + $0x1d8] sm:$0xff]
          %v1956 = vld [vmem:[#allocation14 + $0x1e0] sm:$0xff]
          %v1957 = vld [vmem:[#allocation14 + $0x1e8] sm:$0xff]
          %v1958 = vld [vmem:[#allocation14 + $0x1f0] sm:$0xff]
          %v1959 = vld [vmem:[#allocation14 + $0x1f8] sm:$0xff]
          %v1960 = vld [vmem:[%s7] sm:$0x1]
          %v1962 = vlaneseq
          %v1963 = vshrl.u32 %v1962, 7
          %v1964 = vsub.s32 0, %v1963
          %v1965 = vrot.slane %v1960, %v1964
          %1967 = vmatprep.subr.mxu0 0.0
          %1968 = vmatpush1.msra.mxu0 %v1896
          %1969 = vmatprep.subr.mxu0 0.0
          %1970 = vmatpush1.msra.mxu0 %v1897
          %1971 = vmatprep.subr.mxu0 0.0
          %1972 = vmatpush1.msra.mxu0 %v1898
          %1973 = vmatprep.subr.mxu0 0.0
          %1974 = vmatpush1.msra.mxu0 %v1899
          %1975 = vmatprep.subr.mxu0 0.0
          %1976 = vmatpush1.msra.mxu0 %v1900
          %1977 = vmatprep.subr.mxu0 0.0
          %1978 = vmatpush1.msra.mxu0 %v1901
          %1979 = vmatprep.subr.mxu0 0.0
          %1980 = vmatpush1.msra.mxu0 %v1902
          %1981 = vmatprep.subr.mxu0 0.0
          %1982 = vmatpush1.msra.mxu0 %v1903
          %1983 = vmatprep.subr.mxu0 0.0
          %1984 = vmatpush1.msra.mxu0 %v1904
          %1985 = vmatprep.subr.mxu0 0.0
          %1986 = vmatpush1.msra.mxu0 %v1905
          %1987 = vmatprep.subr.mxu0 0.0
          %1988 = vmatpush1.msra.mxu0 %v1906
          %1989 = vmatprep.subr.mxu0 0.0
          %1990 = vmatpush1.msra.mxu0 %v1907
          %1991 = vmatprep.subr.mxu0 0.0
          %1992 = vmatpush1.msra.mxu0 %v1908
          %1993 = vmatprep.subr.mxu0 0.0
          %1994 = vmatpush1.msra.mxu0 %v1909
          %1995 = vmatprep.subr.mxu0 0.0
          %1996 = vmatpush1.msra.mxu0 %v1910
          %1997 = vmatprep.subr.mxu0 0.0
          %1998 = vmatpush1.msra.mxu0 %v1911
          %1999 = vmatprep.subr.mxu0 0.0
          %2000 = vmatpush1.msra.mxu0 %v1912
          %2001 = vmatprep.subr.mxu0 0.0
          %2002 = vmatpush1.msra.mxu0 %v1913
          %2003 = vmatprep.subr.mxu0 0.0
          %2004 = vmatpush1.msra.mxu0 %v1914
          %2005 = vmatprep.subr.mxu0 0.0
          %2006 = vmatpush1.msra.mxu0 %v1915
          %2007 = vmatprep.subr.mxu0 0.0
          %2008 = vmatpush1.msra.mxu0 %v1916
          %2009 = vmatprep.subr.mxu0 0.0
          %2010 = vmatpush1.msra.mxu0 %v1917
          %2011 = vmatprep.subr.mxu0 0.0
          %2012 = vmatpush1.msra.mxu0 %v1918
          %2013 = vmatprep.subr.mxu0 0.0
          %2014 = vmatpush1.msra.mxu0 %v1919
          %2015 = vmatprep.subr.mxu0 0.0
          %2016 = vmatpush1.msra.mxu0 %v1920
          %2017 = vmatprep.subr.mxu0 0.0
          %2018 = vmatpush1.msra.mxu0 %v1921
          %2019 = vmatprep.subr.mxu0 0.0
          %2020 = vmatpush1.msra.mxu0 %v1922
          %2021 = vmatprep.subr.mxu0 0.0
          %2022 = vmatpush1.msra.mxu0 %v1923
          %2023 = vmatprep.subr.mxu0 0.0
          %2024 = vmatpush1.msra.mxu0 %v1924
          %2025 = vmatprep.subr.mxu0 0.0
          %2026 = vmatpush1.msra.mxu0 %v1925
          %2027 = vmatprep.subr.mxu0 0.0
          %2028 = vmatpush1.msra.mxu0 %v1926
          %2029 = vmatprep.subr.mxu0 0.0
          %2030 = vmatpush1.msra.mxu0 %v1927
          %2031 = vmatprep.mubr.f32.mxu0 %v1893
          %2032 = vmatmul.mubr.f32.gmra.mrb[0].mxu0 %v1892
          %v2033 = vpop.f32.mrb[0].mxu0
          %v2034 = vadd.f32 %v1965, %v2033
          %v2035 = vpop.f32.mrb[0].mxu0
          %2036 = vdwg.mxu0
          %2037 = vmatprep.subr.mxu0 0.0
          %2038 = vmatpush1.msra.mxu0 %v1928
          %2039 = vmatprep.subr.mxu0 0.0
          %2040 = vmatpush1.msra.mxu0 %v1929
          %2041 = vmatprep.subr.mxu0 0.0
          %2042 = vmatpush1.msra.mxu0 %v1930
          %2043 = vmatprep.subr.mxu0 0.0
          %2044 = vmatpush1.msra.mxu0 %v1931
          %2045 = vmatprep.subr.mxu0 0.0
          %2046 = vmatpush1.msra.mxu0 %v1932
          %2047 = vmatprep.subr.mxu0 0.0
          %2048 = vmatpush1.msra.mxu0 %v1933
          %2049 = vmatprep.subr.mxu0 0.0
          %2050 = vmatpush1.msra.mxu0 %v1934
          %2051 = vmatprep.subr.mxu0 0.0
          %2052 = vmatpush1.msra.mxu0 %v1935
          %2053 = vmatprep.subr.mxu0 0.0
          %2054 = vmatpush1.msra.mxu0 %v1936
          %2055 = vmatprep.subr.mxu0 0.0
          %2056 = vmatpush1.msra.mxu0 %v1937
          %2057 = vmatprep.subr.mxu0 0.0
          %2058 = vmatpush1.msra.mxu0 %v1938
          %2059 = vmatprep.subr.mxu0 0.0
          %2060 = vmatpush1.msra.mxu0 %v1939
          %2061 = vmatprep.subr.mxu0 0.0
          %2062 = vmatpush1.msra.mxu0 %v1940
          %2063 = vmatprep.subr.mxu0 0.0
          %2064 = vmatpush1.msra.mxu0 %v1941
          %2065 = vmatprep.subr.mxu0 0.0
          %2066 = vmatpush1.msra.mxu0 %v1942
          %2067 = vmatprep.subr.mxu0 0.0
          %2068 = vmatpush1.msra.mxu0 %v1943
          %2069 = vmatprep.subr.mxu0 0.0
          %2070 = vmatpush1.msra.mxu0 %v1944
          %2071 = vmatprep.subr.mxu0 0.0
          %2072 = vmatpush1.msra.mxu0 %v1945
          %2073 = vmatprep.subr.mxu0 0.0
          %2074 = vmatpush1.msra.mxu0 %v1946
          %2075 = vmatprep.subr.mxu0 0.0
          %2076 = vmatpush1.msra.mxu0 %v1947
          %2077 = vmatprep.subr.mxu0 0.0
          %2078 = vmatpush1.msra.mxu0 %v1948
          %2079 = vmatprep.subr.mxu0 0.0
          %2080 = vmatpush1.msra.mxu0 %v1949
          %2081 = vmatprep.subr.mxu0 0.0
          %2082 = vmatpush1.msra.mxu0 %v1950
          %2083 = vmatprep.subr.mxu0 0.0
          %2084 = vmatpush1.msra.mxu0 %v1951
          %2085 = vmatprep.subr.mxu0 0.0
          %2086 = vmatpush1.msra.mxu0 %v1952
          %2087 = vmatprep.subr.mxu0 0.0
          %2088 = vmatpush1.msra.mxu0 %v1953
          %2089 = vmatprep.subr.mxu0 0.0
          %2090 = vmatpush1.msra.mxu0 %v1954
          %2091 = vmatprep.subr.mxu0 0.0
          %2092 = vmatpush1.msra.mxu0 %v1955
          %2093 = vmatprep.subr.mxu0 0.0
          %2094 = vmatpush1.msra.mxu0 %v1956
          %2095 = vmatprep.subr.mxu0 0.0
          %2096 = vmatpush1.msra.mxu0 %v1957
          %2097 = vmatprep.subr.mxu0 0.0
          %2098 = vmatpush1.msra.mxu0 %v1958
          %2099 = vmatprep.subr.mxu0 0.0
          %2100 = vmatpush1.msra.mxu0 %v1959
          %2101 = vmatprep.mubr.f32.mxu0 %v1895
          %2102 = vmatmul.mubr.f32.gmra.mrb[0].mxu0 %v1894
          %v2103 = vpop.f32.mrb[0].mxu0
          %v2104 = vadd.f32 %v2034, %v2103
          %v2105 = vpop.f32.mrb[0].mxu0
          %2106 = vdwg.mxu0
          %2107 = vst [vmem:[%s427] sm:$0xff] %v2104
        $region80: #{tpu_custom_call.1} parent=51 // pred_fallthru
          _
        %s2108 = sand.u32 %s240, 1
        %s2109 = scalar_lea.sflag [#allocation8], %s2108
        %s2110 = sand.u32 %s240, 1
        %s2111 = smul.addr %s2110, 8
        %s2112 = scalar_lea.vmem [#allocation15], %s2111
        // Predicated region
        $region81: #{tpu_custom_call.1} parent=51 // pred_check
          %p2113 = pneg %p250
        $region82: #{tpu_custom_call.1} parent=51 // pred_check_branch
          %2115 = sbr.rel (%p2113) target = $region84
        $region83: #{tpu_custom_call.1} parent=51 // pred_region
          %s2117 = ssub.s32 128, 128
          %2118 = vsyncadd %s2109, %s2117
          %s2119 = sadd.s32 %s35, %s34
          %s2120 = smul.addr %s2119, 128
          %s2121 = scalar_lea.hbm %s8, %s2120
          %s2123 = sshll.u32 %s2112, 4
          %s2124 = int_to_ptr.vmem [resolvable:$true] %s2123
          %2126 = dma.vmem_to_hbm [thread:$0]  %s2124, 128, %s2121, %s2109
        $region84: #{tpu_custom_call.1} parent=51 // pred_fallthru
          _
      $region52: #{tpu_custom_call.1} parent=5 // pred_fallthru
        _
      %p2127 = scmp.le.s32.totalorder 2, %s24
      // Predicated region
      $region85: #{tpu_custom_call.1} parent=5 // pred_check
        %p2128 = pneg %p2127
      $region86: #{tpu_custom_call.1} parent=5 // pred_check_branch
        %2130 = sbr.rel (%p2128) target = $region88
      $region87: #{tpu_custom_call.1} parent=5 // pred_region
        %s2131 = ssub.s32 %s24, 2
        // Predicated region
        $region89: #{tpu_custom_call.1} parent=87 // pred_check
          %p2132 = pneg %p256
        $region90: #{tpu_custom_call.1} parent=87 // pred_check_branch
          %2134 = sbr.rel (%p2132) target = $region92
        $region91: #{tpu_custom_call.1} parent=87 // pred_region
          %s2135 = sand.u32 %s241, 1
          %s2136 = scalar_lea.sflag [#allocation8], %s2135
          %s2137 = sand.u32 %s241, 1
          %s2138 = smul.addr %s2137, 8
          %s2139 = scalar_lea.vmem [#allocation15], %s2138
          %2140 = dma.done %s2136, 128
        $region92: #{tpu_custom_call.1} parent=87 // pred_fallthru
          _
      $region88: #{tpu_custom_call.1} parent=5 // pred_fallthru
        _
    $region6: #{tpu_custom_call.1} parent=1 // loop_footer
      %s28 = sadd.s32 1, %s24
    $region7: #{tpu_custom_call.1} parent=1 // loop_footer_branch
      %23 = sbr.rel target = $region3
    $region8: #{tpu_custom_call.1} parent=1 // loop_exit
      _
    %2141 = vsyncpa [#allocation7], 1
    %s2142 = scalar_lea.sflag [#allocation7], 1
    %2143 = vsyncpa %s2142, 1
    %2144 = vsyncpa [#allocation10], 1
    %s2145 = scalar_lea.sflag [#allocation10], 1
    %2146 = vsyncpa %s2145, 1
    %2147 = vsyncpa [#allocation13], 1
    %2148 = vsyncpa [#allocation8], 1
    %s2149 = scalar_lea.sflag [#allocation8], 1
    %2150 = vsyncpa %s2149, 1

</llo_original>
